<compile_context>
chip_gen: v5e
topology: v5e:2x2
jax: 0.10.0
libtpu: 0.0.40
codegen_flags: <defaults>
</compile_context>

<pallas_src>
import functools
import numpy as np
import jax
import jax.numpy as jnp
from jax import lax
from jax.experimental import pallas as pl
from jax.experimental.pallas import tpu as pltpu

_VMEM = pl.BlockSpec(memory_space=pltpu.MemorySpace.VMEM)


def _softplus(x):
    # matches F.softplus (beta=1, threshold=20)
    return jnp.where(x > 20.0, x, jnp.log1p(jnp.exp(jnp.minimum(x, 20.0))))


# ----------------------- fused CGCNN kernel ---------------------------------
def _cgcnn_fused_kernel(ids_ref, h0_ref, dist_ref, filt_ref,
                        src_ref, dst_ref, dstr_ref,
                        emb_ref, w_ref, b_ref,
                        gamma_ref, beta_ref, mean_ref, var_ref,
                        out_ref, *, n_conv, use_h, gdf_var, eps):
    N, C = out_ref.shape
    E = dist_ref.shape[0]

    # ---- initial node features (embedding(z) unless external h is supplied) ----
    if use_h:
        x = h0_ref[...]                                                     # (N, C) f32
    else:
        V = emb_ref.shape[0]
        oh_v = (lax.broadcasted_iota(jnp.int32, (N, V), 1) == ids_ref[...])
        oh_v = oh_v.astype(jnp.float32).astype(jnp.bfloat16)                # (N, V) exact 0/1
        x = jnp.dot(oh_v, emb_ref[...], preferred_element_type=jnp.float32)  # (N, C) f32

    # ---- gaussian distance expansion (computed once, reused by all layers) ----
    diff = dist_ref[...] - filt_ref[...]                                    # (E,1)-(1,D) -> (E,D)
    ea = jnp.exp(-(diff * diff) * (1.0 / (gdf_var * gdf_var)))
    ea_b = ea.astype(jnp.bfloat16)

    # ---- one-hot gather / scatter operators, built ONCE, bf16 on the MXU ------
    # PyG convention: i = target = edge_index[1] (dst), j = source = edge_index[0] (src)
    node_iota = lax.broadcasted_iota(jnp.int32, (E, N), 1)
    src_oh = (node_iota == src_ref[...]).astype(jnp.float32).astype(jnp.bfloat16)   # (E, N)
    dst_oh = (node_iota == dst_ref[...]).astype(jnp.float32).astype(jnp.bfloat16)   # (E, N)
    # scatter operator pre-transposed: (N, E); padded edges (dst == N) give a zero column
    dst_ohT = (lax.broadcasted_iota(jnp.int32, (N, E), 0) == dstr_ref[...])
    dst_ohT = dst_ohT.astype(jnp.float32).astype(jnp.bfloat16)                      # (N, E)

    # ---- n_conv CGConv(batch_norm=True, aggr='add') layers, statically unrolled ----
    for l in range(n_conv):
        xb = x.astype(jnp.bfloat16)
        x_i = jnp.dot(dst_oh, xb, preferred_element_type=jnp.float32)       # (E, C) gather x[dst]
        x_j = jnp.dot(src_oh, xb, preferred_element_type=jnp.float32)       # (E, C) gather x[src]

        w = w_ref[l]                                                        # (2C+D, 2C) bf16 = [lin_f | lin_s]
        z = (jnp.dot(x_i.astype(jnp.bfloat16), w[:C, :],
                     preferred_element_type=jnp.float32)
             + jnp.dot(x_j.astype(jnp.bfloat16), w[C:2 * C, :],
                       preferred_element_type=jnp.float32)
             + jnp.dot(ea_b, w[2 * C:, :],
                       preferred_element_type=jnp.float32)
             + b_ref[l])                                                    # (E, 2C) f32

        msg = jax.nn.sigmoid(z[:, :C]) * _softplus(z[:, C:])                # (E, C) f32

        # scatter-add onto target nodes (padded edges contribute nothing)
        agg = jnp.dot(dst_ohT, msg.astype(jnp.bfloat16),
                      preferred_element_type=jnp.float32)                   # (N, C) f32

        # BatchNorm1d (eval mode, running statistics) + residual
        bn = (agg - mean_ref[l]) * lax.rsqrt(var_ref[l] + eps) * gamma_ref[l] + beta_ref[l]
        x = bn + x

    out_ref[...] = x


# ----------------------- parameters (deterministic) --------------------------
def init_params(key, atom_fea_len, nbr_fea_len, n_conv, radius):
    C, D = atom_fea_len, nbr_fea_len
    fan_in = 2 * C + D
    bound = 1.0 / np.sqrt(fan_in)
    keys = jax.random.split(key, 5)
    w_f = jax.random.uniform(keys[1], (n_conv, fan_in, C), jnp.float32, -bound, bound)
    w_s = jax.random.uniform(keys[2], (n_conv, fan_in, C), jnp.float32, -bound, bound)
    b_f = jax.random.uniform(keys[3], (n_conv, 1, C), jnp.float32, -bound, bound)
    b_s = jax.random.uniform(keys[4], (n_conv, 1, C), jnp.float32, -bound, bound)
    return {
        # nn.Embedding(125, C) default init: N(0, 1)
        "embedding": jax.random.normal(keys[0], (125, C), jnp.float32),
        # register_buffer('gaussian_filters', linspace(0, radius, nbr_fea_len))
        "gaussian_filters": jnp.linspace(0.0, radius, D, dtype=jnp.float32),
        # fused lin_f | lin_s (weights already transposed vs torch nn.Linear)
        "w": jnp.concatenate([w_f, w_s], axis=-1),          # (n_conv, 2C+D, 2C)
        "b": jnp.concatenate([b_f, b_s], axis=-1),          # (n_conv, 1, 2C)
        # BatchNorm1d defaults (gamma=1, beta=0, running mean/var = 0/1)
        "bn_gamma": jnp.ones((n_conv, 1, C), jnp.float32),
        "bn_beta": jnp.zeros((n_conv, 1, C), jnp.float32),
        "bn_mean": jnp.zeros((n_conv, 1, C), jnp.float32),
        "bn_var": jnp.ones((n_conv, 1, C), jnp.float32),
    }


# ----------------------- graph construction (host glue, vectorized) ----------
def radius_graph_np(pos, batch, r, max_num_neighbors):
    pos = np.asarray(pos, np.float32)
    batch = np.asarray(batch)
    N = pos.shape[0]
    d = np.linalg.norm(pos[:, None, :] - pos[None, :, :], axis=-1)      # d[i, j]
    valid = (batch[:, None] == batch[None, :]) & (d < r)
    np.fill_diagonal(valid, False)
    d_sorted_key = np.where(valid, d, np.inf)
    order = np.argsort(d_sorted_key, axis=1, kind="stable")             # per target: nearest first
    sorted_valid = np.take_along_axis(valid, order, axis=1)
    keep = sorted_valid & (np.arange(N)[None, :] < max_num_neighbors)
    tgt, rank = np.nonzero(keep)
    src = order[tgt, rank]                                              # edge_index[0] = source j
    dst = tgt                                                           # edge_index[1] = target i
    dist = d[dst, src]
    return src.astype(np.int32), dst.astype(np.int32), dist.astype(np.float32)


# ----------------------- CGCNN forward ---------------------------------------
def cgcnn_forward(params, atomic_numbers, pos, batch, h=None, *,
                  radius, max_num_neighbors, gdf_var, vnode_z, eps=1e-5):
    atomic_numbers = np.asarray(atomic_numbers)
    batch = np.asarray(batch)
    N = atomic_numbers.shape[0]
    C = params["embedding"].shape[1]
    D = params["gaussian_filters"].shape[0]
    n_conv = params["w"].shape[0]

    # _get_edges: radius_graph + distances (host glue).
    # TODO(synk): `obtain_indices` (VNODE / msg_direction edge filtering) is not defined in
    # the reference module; all radius-graph edges are kept.
    src, dst, dist = radius_graph_np(pos, batch, radius, max_num_neighbors)
    E = src.shape[0]
    E_pad = max(8, -(-E // 8) * 8)
    src_p = np.zeros((E_pad, 1), np.int32)
    dst_p = np.full((E_pad, 1), N, np.int32)    # out-of-range target -> padded edge scatters nothing
    dist_p = np.zeros((E_pad, 1), np.float32)
    src_p[:E, 0] = src
    dst_p[:E, 0] = dst
    dist_p[:E, 0] = dist
    dst_row = dst_p.reshape(1, E_pad)

    use_h = h is not None
    h0 = (jnp.asarray(h, jnp.float32) if use_h
          else jnp.zeros((N, C), jnp.float32))

    kernel = functools.partial(_cgcnn_fused_kernel, n_conv=int(n_conv), use_h=use_h,
                               gdf_var=float(gdf_var), eps=float(eps))
    atom_fea = pl.pallas_call(
        kernel,
        out_shape=jax.ShapeDtypeStruct((N, C), jnp.float32),
        in_specs=[_VMEM] * 14,
        out_specs=_VMEM,
    )(
        jnp.asarray(atomic_numbers.reshape(N, 1), jnp.int32),
        h0,
        jnp.asarray(dist_p),
        params["gaussian_filters"].reshape(1, D).astype(jnp.float32),
        jnp.asarray(src_p),
        jnp.asarray(dst_p),
        jnp.asarray(dst_row),
        params["embedding"].astype(jnp.bfloat16),
        params["w"].astype(jnp.bfloat16),
        params["b"].astype(jnp.float32),
        params["bn_gamma"], params["bn_beta"], params["bn_mean"], params["bn_var"],
    )

    # vn/pn split: indices from host-known atomic numbers, gathers stay on device (no sync).
    vn_idx = jnp.asarray(np.nonzero(atomic_numbers == vnode_z)[0].astype(np.int32))
    pn_idx = jnp.asarray(np.nonzero(atomic_numbers != vnode_z)[0].astype(np.int32))
    batch_j = jnp.asarray(batch, jnp.int32)
    return {
        "feat": atom_fea,
        "batch": batch_j,
        "vn_feat": atom_fea[vn_idx],
        "vn_batch": batch_j[vn_idx],
        "pn_feat": atom_fea[pn_idx],
        "pn_batch": batch_j[pn_idx],
    }


if __name__ == "__main__":
    ATOM_FEA_LEN = 32
    NBR_FEA_LEN = 16
    N_CONV = 2
    RADIUS = 3.0
    MAX_NUM_NEIGHBORS = 12
    GDF_VAR = 0.5
    VNODE_Z = 100          # DEFAULT_VNODE_Z not given; any id < 125 works

    key = jax.random.PRNGKey(0)
    k_param, k_z, k_pos = jax.random.split(key, 3)

    N = 16  # 2 structures x 8 atoms
    atomic_numbers = np.array(jax.random.randint(k_z, (N,), 1, 119), np.int32)
    atomic_numbers[7] = VNODE_Z    # one virtual node per structure
    atomic_numbers[15] = VNODE_Z
    pos = np.asarray(jax.random.uniform(k_pos, (N, 3), jnp.float32, 0.0, 2.0))
    batch = np.asarray([0] * 8 + [1] * 8, np.int32)

    params = init_params(k_param, ATOM_FEA_LEN, NBR_FEA_LEN, N_CONV, RADIUS)

    out = cgcnn_forward(params, atomic_numbers, pos, batch, h=None,
                        radius=RADIUS, max_num_neighbors=MAX_NUM_NEIGHBORS,
                        gdf_var=GDF_VAR, vnode_z=VNODE_Z)
    jax.block_until_ready(out)

    assert out["feat"].shape == (N, ATOM_FEA_LEN)
    assert out["vn_feat"].shape[0] + out["pn_feat"].shape[0] == N
    assert np.all(np.isfinite(np.asarray(out["feat"])))
    print("KERNEL_OK")
</pallas_src>

<mosaic_0001>
module attributes {stable_mosaic.version = 11 : i64} {
  func.func @_cgcnn_fused_kernel(%arg0: memref<16x1xi32, #tpu.memory_space<vmem>>, %arg1: memref<16x32xf32, #tpu.memory_space<vmem>>, %arg2: memref<112x1xf32, #tpu.memory_space<vmem>>, %arg3: memref<1x16xf32, #tpu.memory_space<vmem>>, %arg4: memref<112x1xi32, #tpu.memory_space<vmem>>, %arg5: memref<112x1xi32, #tpu.memory_space<vmem>>, %arg6: memref<1x112xi32, #tpu.memory_space<vmem>>, %arg7: memref<125x32xbf16, #tpu.memory_space<vmem>>, %arg8: memref<2x80x64xbf16, #tpu.memory_space<vmem>>, %arg9: memref<2x1x64xf32, #tpu.memory_space<vmem>>, %arg10: memref<2x1x32xf32, #tpu.memory_space<vmem>>, %arg11: memref<2x1x32xf32, #tpu.memory_space<vmem>>, %arg12: memref<2x1x32xf32, #tpu.memory_space<vmem>>, %arg13: memref<2x1x32xf32, #tpu.memory_space<vmem>>, %arg14: memref<16x32xf32, #tpu.memory_space<vmem>>) attributes {dimension_semantics = [], scalar_prefetch = 0 : i64, scratch_operands = 0 : i64, tpu.core_type = #tpu.core_type<tc>} {
    %0 = tpu.iota {dimensions = array<i32: 1>} : vector<16x125xi32>
    %c0 = arith.constant 0 : index
    %c0_0 = arith.constant 0 : index
    %1 = vector.load %arg0[%c0, %c0_0] : memref<16x1xi32, #tpu.memory_space<vmem>>, vector<16x1xi32>
    %2 = vector.broadcast %1 : vector<16x1xi32> to vector<16x125xi32>
    %3 = arith.cmpi eq, %0, %2 : vector<16x125xi32>
    %4 = arith.extui %3 : vector<16x125xi1> to vector<16x125xi32>
    %5 = arith.sitofp %4 : vector<16x125xi32> to vector<16x125xf32>
    %6 = arith.truncf %5 : vector<16x125xf32> to vector<16x125xbf16>
    %c0_1 = arith.constant 0 : index
    %c0_2 = arith.constant 0 : index
    %7 = vector.load %arg7[%c0_1, %c0_2] : memref<125x32xbf16, #tpu.memory_space<vmem>>, vector<125x32xbf16>
    %cst = arith.constant dense<0.000000e+00> : vector<16x32xf32>
    %8 = tpu.matmul %6, %7, %cst {dimension_numbers = #tpu.dot_dimension_numbers<[1], [0], [0], [1], [0, 0, 1, 1], [], []>} : vector<16x125xbf16>, vector<125x32xbf16>, vector<16x32xf32> -> vector<16x32xf32>
    %c0_3 = arith.constant 0 : index
    %c0_4 = arith.constant 0 : index
    %9 = vector.load %arg2[%c0_3, %c0_4] : memref<112x1xf32, #tpu.memory_space<vmem>>, vector<112x1xf32>
    %c0_5 = arith.constant 0 : index
    %c0_6 = arith.constant 0 : index
    %10 = vector.load %arg3[%c0_5, %c0_6] : memref<1x16xf32, #tpu.memory_space<vmem>>, vector<1x16xf32>
    %11 = vector.broadcast %9 : vector<112x1xf32> to vector<112x16xf32>
    %12 = vector.broadcast %10 : vector<1x16xf32> to vector<112x16xf32>
    %13 = arith.subf %11, %12 : vector<112x16xf32>
    %14 = arith.mulf %13, %13 : vector<112x16xf32>
    %cst_7 = arith.constant 0.000000e+00 : f32
    %15 = vector.broadcast %cst_7 : f32 to vector<112x16xf32>
    %16 = arith.subf %15, %14 : vector<112x16xf32>
    %cst_8 = arith.constant 4.000000e+00 : f32
    %17 = vector.broadcast %cst_8 : f32 to vector<112x16xf32>
    %18 = arith.mulf %16, %17 : vector<112x16xf32>
    %19 = math.exp %18 : vector<112x16xf32>
    %20 = arith.truncf %19 : vector<112x16xf32> to vector<112x16xbf16>
    %21 = tpu.iota {dimensions = array<i32: 1>} : vector<112x16xi32>
    %c0_9 = arith.constant 0 : index
    %c0_10 = arith.constant 0 : index
    %22 = vector.load %arg4[%c0_9, %c0_10] : memref<112x1xi32, #tpu.memory_space<vmem>>, vector<112x1xi32>
    %23 = vector.broadcast %22 : vector<112x1xi32> to vector<112x16xi32>
    %24 = arith.cmpi eq, %21, %23 : vector<112x16xi32>
    %25 = arith.extui %24 : vector<112x16xi1> to vector<112x16xi32>
    %26 = arith.sitofp %25 : vector<112x16xi32> to vector<112x16xf32>
    %27 = arith.truncf %26 : vector<112x16xf32> to vector<112x16xbf16>
    %c0_11 = arith.constant 0 : index
    %c0_12 = arith.constant 0 : index
    %28 = vector.load %arg5[%c0_11, %c0_12] : memref<112x1xi32, #tpu.memory_space<vmem>>, vector<112x1xi32>
    %29 = vector.broadcast %28 : vector<112x1xi32> to vector<112x16xi32>
    %30 = arith.cmpi eq, %21, %29 : vector<112x16xi32>
    %31 = arith.extui %30 : vector<112x16xi1> to vector<112x16xi32>
    %32 = arith.sitofp %31 : vector<112x16xi32> to vector<112x16xf32>
    %33 = arith.truncf %32 : vector<112x16xf32> to vector<112x16xbf16>
    %34 = tpu.iota {dimensions = array<i32: 0>} : vector<16x112xi32>
    %c0_13 = arith.constant 0 : index
    %c0_14 = arith.constant 0 : index
    %35 = vector.load %arg6[%c0_13, %c0_14] : memref<1x112xi32, #tpu.memory_space<vmem>>, vector<1x112xi32>
    %36 = vector.broadcast %35 : vector<1x112xi32> to vector<16x112xi32>
    %37 = arith.cmpi eq, %34, %36 : vector<16x112xi32>
    %38 = arith.extui %37 : vector<16x112xi1> to vector<16x112xi32>
    %39 = arith.sitofp %38 : vector<16x112xi32> to vector<16x112xf32>
    %40 = arith.truncf %39 : vector<16x112xf32> to vector<16x112xbf16>
    %41 = arith.truncf %8 : vector<16x32xf32> to vector<16x32xbf16>
    %cst_15 = arith.constant dense<0.000000e+00> : vector<112x32xf32>
    %42 = tpu.matmul %33, %41, %cst_15 {dimension_numbers = #tpu.dot_dimension_numbers<[1], [0], [0], [1], [0, 0, 1, 1], [], []>} : vector<112x16xbf16>, vector<16x32xbf16>, vector<112x32xf32> -> vector<112x32xf32>
    %cst_16 = arith.constant dense<0.000000e+00> : vector<112x32xf32>
    %43 = tpu.matmul %27, %41, %cst_16 {dimension_numbers = #tpu.dot_dimension_numbers<[1], [0], [0], [1], [0, 0, 1, 1], [], []>} : vector<112x16xbf16>, vector<16x32xbf16>, vector<112x32xf32> -> vector<112x32xf32>
    %c0_17 = arith.constant 0 : index
    %c0_18 = arith.constant 0 : index
    %c0_19 = arith.constant 0 : index
    %44 = vector.load %arg8[%c0_17, %c0_18, %c0_19] : memref<2x80x64xbf16, #tpu.memory_space<vmem>>, vector<1x80x64xbf16>
    %45 = vector.shape_cast %44 : vector<1x80x64xbf16> to vector<80x64xbf16>
    %46 = arith.truncf %42 : vector<112x32xf32> to vector<112x32xbf16>
    %47 = vector.extract_strided_slice %45 {offsets = [0, 0], sizes = [32, 64], strides = [1, 1]} : vector<80x64xbf16> to vector<32x64xbf16>
    %cst_20 = arith.constant dense<0.000000e+00> : vector<112x64xf32>
    %48 = tpu.matmul %46, %47, %cst_20 {dimension_numbers = #tpu.dot_dimension_numbers<[1], [0], [0], [1], [0, 0, 1, 1], [], []>} : vector<112x32xbf16>, vector<32x64xbf16>, vector<112x64xf32> -> vector<112x64xf32>
    %49 = arith.truncf %43 : vector<112x32xf32> to vector<112x32xbf16>
    %50 = vector.extract_strided_slice %45 {offsets = [32, 0], sizes = [32, 64], strides = [1, 1]} : vector<80x64xbf16> to vector<32x64xbf16>
    %cst_21 = arith.constant dense<0.000000e+00> : vector<112x64xf32>
    %51 = tpu.matmul %49, %50, %cst_21 {dimension_numbers = #tpu.dot_dimension_numbers<[1], [0], [0], [1], [0, 0, 1, 1], [], []>} : vector<112x32xbf16>, vector<32x64xbf16>, vector<112x64xf32> -> vector<112x64xf32>
    %52 = arith.addf %48, %51 : vector<112x64xf32>
    %53 = vector.extract_strided_slice %45 {offsets = [64, 0], sizes = [16, 64], strides = [1, 1]} : vector<80x64xbf16> to vector<16x64xbf16>
    %cst_22 = arith.constant dense<0.000000e+00> : vector<112x64xf32>
    %54 = tpu.matmul %20, %53, %cst_22 {dimension_numbers = #tpu.dot_dimension_numbers<[1], [0], [0], [1], [0, 0, 1, 1], [], []>} : vector<112x16xbf16>, vector<16x64xbf16>, vector<112x64xf32> -> vector<112x64xf32>
    %55 = arith.addf %52, %54 : vector<112x64xf32>
    %c0_23 = arith.constant 0 : index
    %c0_24 = arith.constant 0 : index
    %c0_25 = arith.constant 0 : index
    %56 = vector.load %arg9[%c0_23, %c0_24, %c0_25] : memref<2x1x64xf32, #tpu.memory_space<vmem>>, vector<1x1x64xf32>
    %57 = vector.shape_cast %56 : vector<1x1x64xf32> to vector<1x64xf32>
    %58 = vector.broadcast %57 : vector<1x64xf32> to vector<112x64xf32>
    %59 = arith.addf %55, %58 : vector<112x64xf32>
    %60 = vector.extract_strided_slice %59 {offsets = [0, 0], sizes = [112, 32], strides = [1, 1]} : vector<112x64xf32> to vector<112x32xf32>
    %61 = arith.negf %60 : vector<112x32xf32>
    %62 = math.exp %61 : vector<112x32xf32>
    %cst_26 = arith.constant 1.000000e+00 : f32
    %63 = vector.broadcast %cst_26 : f32 to vector<112x32xf32>
    %64 = arith.addf %63, %62 : vector<112x32xf32>
    %65 = arith.divf %63, %64 : vector<112x32xf32>
    %66 = vector.extract_strided_slice %59 {offsets = [0, 32], sizes = [112, 32], strides = [1, 1]} : vector<112x64xf32> to vector<112x32xf32>
    %cst_27 = arith.constant 2.000000e+01 : f32
    %67 = vector.broadcast %cst_27 : f32 to vector<112x32xf32>
    %68 = arith.cmpf ogt, %66, %67 : vector<112x32xf32>
    %cst_28 = arith.constant 2.000000e+01 : f32
    %69 = vector.broadcast %cst_28 : f32 to vector<112x32xf32>
    %70 = arith.minimumf %66, %69 : vector<112x32xf32>
    %71 = math.exp %70 : vector<112x32xf32>
    %72 = math.log1p %71 : vector<112x32xf32>
    %73 = arith.select %68, %66, %72 : vector<112x32xi1>, vector<112x32xf32>
    %74 = arith.mulf %65, %73 : vector<112x32xf32>
    %75 = arith.truncf %74 : vector<112x32xf32> to vector<112x32xbf16>
    %cst_29 = arith.constant dense<0.000000e+00> : vector<16x32xf32>
    %76 = tpu.matmul %40, %75, %cst_29 {dimension_numbers = #tpu.dot_dimension_numbers<[1], [0], [0], [1], [0, 0, 1, 1], [], []>} : vector<16x112xbf16>, vector<112x32xbf16>, vector<16x32xf32> -> vector<16x32xf32>
    %c0_30 = arith.constant 0 : index
    %c0_31 = arith.constant 0 : index
    %c0_32 = arith.constant 0 : index
    %77 = vector.load %arg12[%c0_30, %c0_31, %c0_32] : memref<2x1x32xf32, #tpu.memory_space<vmem>>, vector<1x1x32xf32>
    %78 = vector.shape_cast %77 : vector<1x1x32xf32> to vector<1x32xf32>
    %79 = vector.broadcast %78 : vector<1x32xf32> to vector<16x32xf32>
    %80 = arith.subf %76, %79 : vector<16x32xf32>
    %c0_33 = arith.constant 0 : index
    %c0_34 = arith.constant 0 : index
    %c0_35 = arith.constant 0 : index
    %81 = vector.load %arg13[%c0_33, %c0_34, %c0_35] : memref<2x1x32xf32, #tpu.memory_space<vmem>>, vector<1x1x32xf32>
    %82 = vector.shape_cast %81 : vector<1x1x32xf32> to vector<1x32xf32>
    %cst_36 = arith.constant 9.99999974E-6 : f32
    %83 = vector.broadcast %cst_36 : f32 to vector<1x32xf32>
    %84 = arith.addf %82, %83 : vector<1x32xf32>
    %85 = math.rsqrt %84 : vector<1x32xf32>
    %86 = vector.broadcast %85 : vector<1x32xf32> to vector<16x32xf32>
    %87 = arith.mulf %80, %86 : vector<16x32xf32>
    %c0_37 = arith.constant 0 : index
    %c0_38 = arith.constant 0 : index
    %c0_39 = arith.constant 0 : index
    %88 = vector.load %arg10[%c0_37, %c0_38, %c0_39] : memref<2x1x32xf32, #tpu.memory_space<vmem>>, vector<1x1x32xf32>
    %89 = vector.shape_cast %88 : vector<1x1x32xf32> to vector<1x32xf32>
    %90 = vector.broadcast %89 : vector<1x32xf32> to vector<16x32xf32>
    %91 = arith.mulf %87, %90 : vector<16x32xf32>
    %c0_40 = arith.constant 0 : index
    %c0_41 = arith.constant 0 : index
    %c0_42 = arith.constant 0 : index
    %92 = vector.load %arg11[%c0_40, %c0_41, %c0_42] : memref<2x1x32xf32, #tpu.memory_space<vmem>>, vector<1x1x32xf32>
    %93 = vector.shape_cast %92 : vector<1x1x32xf32> to vector<1x32xf32>
    %94 = vector.broadcast %93 : vector<1x32xf32> to vector<16x32xf32>
    %95 = arith.addf %91, %94 : vector<16x32xf32>
    %96 = arith.addf %95, %8 : vector<16x32xf32>
    %97 = arith.truncf %96 : vector<16x32xf32> to vector<16x32xbf16>
    %cst_43 = arith.constant dense<0.000000e+00> : vector<112x32xf32>
    %98 = tpu.matmul %33, %97, %cst_43 {dimension_numbers = #tpu.dot_dimension_numbers<[1], [0], [0], [1], [0, 0, 1, 1], [], []>} : vector<112x16xbf16>, vector<16x32xbf16>, vector<112x32xf32> -> vector<112x32xf32>
    %cst_44 = arith.constant dense<0.000000e+00> : vector<112x32xf32>
    %99 = tpu.matmul %27, %97, %cst_44 {dimension_numbers = #tpu.dot_dimension_numbers<[1], [0], [0], [1], [0, 0, 1, 1], [], []>} : vector<112x16xbf16>, vector<16x32xbf16>, vector<112x32xf32> -> vector<112x32xf32>
    %c1 = arith.constant 1 : index
    %c0_45 = arith.constant 0 : index
    %c0_46 = arith.constant 0 : index
    %100 = vector.load %arg8[%c1, %c0_45, %c0_46] : memref<2x80x64xbf16, #tpu.memory_space<vmem>>, vector<1x80x64xbf16>
    %101 = vector.shape_cast %100 : vector<1x80x64xbf16> to vector<80x64xbf16>
    %102 = arith.truncf %98 : vector<112x32xf32> to vector<112x32xbf16>
    %103 = vector.extract_strided_slice %101 {offsets = [0, 0], sizes = [32, 64], strides = [1, 1]} : vector<80x64xbf16> to vector<32x64xbf16>
    %cst_47 = arith.constant dense<0.000000e+00> : vector<112x64xf32>
    %104 = tpu.matmul %102, %103, %cst_47 {dimension_numbers = #tpu.dot_dimension_numbers<[1], [0], [0], [1], [0, 0, 1, 1], [], []>} : vector<112x32xbf16>, vector<32x64xbf16>, vector<112x64xf32> -> vector<112x64xf32>
    %105 = arith.truncf %99 : vector<112x32xf32> to vector<112x32xbf16>
    %106 = vector.extract_strided_slice %101 {offsets = [32, 0], sizes = [32, 64], strides = [1, 1]} : vector<80x64xbf16> to vector<32x64xbf16>
    %cst_48 = arith.constant dense<0.000000e+00> : vector<112x64xf32>
    %107 = tpu.matmul %105, %106, %cst_48 {dimension_numbers = #tpu.dot_dimension_numbers<[1], [0], [0], [1], [0, 0, 1, 1], [], []>} : vector<112x32xbf16>, vector<32x64xbf16>, vector<112x64xf32> -> vector<112x64xf32>
    %108 = arith.addf %104, %107 : vector<112x64xf32>
    %109 = vector.extract_strided_slice %101 {offsets = [64, 0], sizes = [16, 64], strides = [1, 1]} : vector<80x64xbf16> to vector<16x64xbf16>
    %cst_49 = arith.constant dense<0.000000e+00> : vector<112x64xf32>
    %110 = tpu.matmul %20, %109, %cst_49 {dimension_numbers = #tpu.dot_dimension_numbers<[1], [0], [0], [1], [0, 0, 1, 1], [], []>} : vector<112x16xbf16>, vector<16x64xbf16>, vector<112x64xf32> -> vector<112x64xf32>
    %111 = arith.addf %108, %110 : vector<112x64xf32>
    %c1_50 = arith.constant 1 : index
    %c0_51 = arith.constant 0 : index
    %c0_52 = arith.constant 0 : index
    %112 = vector.load %arg9[%c1_50, %c0_51, %c0_52] : memref<2x1x64xf32, #tpu.memory_space<vmem>>, vector<1x1x64xf32>
    %113 = vector.shape_cast %112 : vector<1x1x64xf32> to vector<1x64xf32>
    %114 = vector.broadcast %113 : vector<1x64xf32> to vector<112x64xf32>
    %115 = arith.addf %111, %114 : vector<112x64xf32>
    %116 = vector.extract_strided_slice %115 {offsets = [0, 0], sizes = [112, 32], strides = [1, 1]} : vector<112x64xf32> to vector<112x32xf32>
    %117 = arith.negf %116 : vector<112x32xf32>
    %118 = math.exp %117 : vector<112x32xf32>
    %cst_53 = arith.constant 1.000000e+00 : f32
    %119 = vector.broadcast %cst_53 : f32 to vector<112x32xf32>
    %120 = arith.addf %119, %118 : vector<112x32xf32>
    %121 = arith.divf %119, %120 : vector<112x32xf32>
    %122 = vector.extract_strided_slice %115 {offsets = [0, 32], sizes = [112, 32], strides = [1, 1]} : vector<112x64xf32> to vector<112x32xf32>
    %cst_54 = arith.constant 2.000000e+01 : f32
    %123 = vector.broadcast %cst_54 : f32 to vector<112x32xf32>
    %124 = arith.cmpf ogt, %122, %123 : vector<112x32xf32>
    %cst_55 = arith.constant 2.000000e+01 : f32
    %125 = vector.broadcast %cst_55 : f32 to vector<112x32xf32>
    %126 = arith.minimumf %122, %125 : vector<112x32xf32>
    %127 = math.exp %126 : vector<112x32xf32>
    %128 = math.log1p %127 : vector<112x32xf32>
    %129 = arith.select %124, %122, %128 : vector<112x32xi1>, vector<112x32xf32>
    %130 = arith.mulf %121, %129 : vector<112x32xf32>
    %131 = arith.truncf %130 : vector<112x32xf32> to vector<112x32xbf16>
    %cst_56 = arith.constant dense<0.000000e+00> : vector<16x32xf32>
    %132 = tpu.matmul %40, %131, %cst_56 {dimension_numbers = #tpu.dot_dimension_numbers<[1], [0], [0], [1], [0, 0, 1, 1], [], []>} : vector<16x112xbf16>, vector<112x32xbf16>, vector<16x32xf32> -> vector<16x32xf32>
    %c1_57 = arith.constant 1 : index
    %c0_58 = arith.constant 0 : index
    %c0_59 = arith.constant 0 : index
    %133 = vector.load %arg12[%c1_57, %c0_58, %c0_59] : memref<2x1x32xf32, #tpu.memory_space<vmem>>, vector<1x1x32xf32>
    %134 = vector.shape_cast %133 : vector<1x1x32xf32> to vector<1x32xf32>
    %135 = vector.broadcast %134 : vector<1x32xf32> to vector<16x32xf32>
    %136 = arith.subf %132, %135 : vector<16x32xf32>
    %c1_60 = arith.constant 1 : index
    %c0_61 = arith.constant 0 : index
    %c0_62 = arith.constant 0 : index
    %137 = vector.load %arg13[%c1_60, %c0_61, %c0_62] : memref<2x1x32xf32, #tpu.memory_space<vmem>>, vector<1x1x32xf32>
    %138 = vector.shape_cast %137 : vector<1x1x32xf32> to vector<1x32xf32>
    %cst_63 = arith.constant 9.99999974E-6 : f32
    %139 = vector.broadcast %cst_63 : f32 to vector<1x32xf32>
    %140 = arith.addf %138, %139 : vector<1x32xf32>
    %141 = math.rsqrt %140 : vector<1x32xf32>
    %142 = vector.broadcast %141 : vector<1x32xf32> to vector<16x32xf32>
    %143 = arith.mulf %136, %142 : vector<16x32xf32>
    %c1_64 = arith.constant 1 : index
    %c0_65 = arith.constant 0 : index
    %c0_66 = arith.constant 0 : index
    %144 = vector.load %arg10[%c1_64, %c0_65, %c0_66] : memref<2x1x32xf32, #tpu.memory_space<vmem>>, vector<1x1x32xf32>
    %145 = vector.shape_cast %144 : vector<1x1x32xf32> to vector<1x32xf32>
    %146 = vector.broadcast %145 : vector<1x32xf32> to vector<16x32xf32>
    %147 = arith.mulf %143, %146 : vector<16x32xf32>
    %c1_67 = arith.constant 1 : index
    %c0_68 = arith.constant 0 : index
    %c0_69 = arith.constant 0 : index
    %148 = vector.load %arg11[%c1_67, %c0_68, %c0_69] : memref<2x1x32xf32, #tpu.memory_space<vmem>>, vector<1x1x32xf32>
    %149 = vector.shape_cast %148 : vector<1x1x32xf32> to vector<1x32xf32>
    %150 = vector.broadcast %149 : vector<1x32xf32> to vector<16x32xf32>
    %151 = arith.addf %147, %150 : vector<16x32xf32>
    %152 = arith.addf %151, %96 : vector<16x32xf32>
    %c0_70 = arith.constant 0 : index
    %c0_71 = arith.constant 0 : index
    %153 = vector.load %arg14[%c0_70, %c0_71] : memref<16x32xf32, #tpu.memory_space<vmem>>, vector<16x32xf32>
    tpu.vector_store %arg14[%c0_70, %c0_71], %152 {strides = array<i32>} : memref<16x32xf32, #tpu.memory_space<vmem>>, vector<16x32xf32>,
    return
  }
}

</mosaic_0001>

<llo_original>
// kernel: tpu_custom_call.1
$region0: #{tpu_custom_call.1}
  #allocation0 [shape = 'u32[]', space=smem, size = 0x4, offset = 0x4, fixed_abs, tag = 'smem constant byte address 0x4 - core index']
  #allocation1 [shape = 'u32[72,128]{1,0:T(1,128)}', space=vmem, size = 0x9000, scoped, tag = 'internal scratch']
  %s0 = inlined_call_operand.vmem [shape: s32[16,1], index: 0, kind: input, shape index: {}]
  %s1 = inlined_call_operand.vmem [shape: f32[16,32], index: 1, kind: input, shape index: {}]
  %s2 = inlined_call_operand.vmem [shape: f32[112,1], index: 2, kind: input, shape index: {}]
  %s3 = inlined_call_operand.vmem [shape: f32[1,16], index: 3, kind: input, shape index: {}]
  %s4 = inlined_call_operand.vmem [shape: s32[112,1], index: 4, kind: input, shape index: {}]
  %s5 = inlined_call_operand.vmem [shape: s32[112,1], index: 5, kind: input, shape index: {}]
  %s6 = inlined_call_operand.vmem [shape: s32[1,112], index: 6, kind: input, shape index: {}]
  %s7 = inlined_call_operand.vmem [shape: bf16[125,32], index: 7, kind: input, shape index: {}]
  %s8 = inlined_call_operand.vmem [shape: bf16[2,80,64], index: 8, kind: input, shape index: {}]
  %s9 = inlined_call_operand.vmem [shape: f32[2,1,64], index: 9, kind: input, shape index: {}]
  %s10 = inlined_call_operand.vmem [shape: f32[2,1,32], index: 10, kind: input, shape index: {}]
  %s11 = inlined_call_operand.vmem [shape: f32[2,1,32], index: 11, kind: input, shape index: {}]
  %s12 = inlined_call_operand.vmem [shape: f32[2,1,32], index: 12, kind: input, shape index: {}]
  %s13 = inlined_call_operand.vmem [shape: f32[2,1,32], index: 13, kind: input, shape index: {}]
  %s14 = inlined_call_operand.hbm [shape: f32[16,32], index: 14, kind: output, shape index: {}]
  %s15 = sld [smem:[#allocation0]]
  $region66: #{tpu_custom_call.1} parent=0
    _
  %s17 = ssub.s32 1, %s15
  %s18 = scalar_select 0, %s17, %s15
  $region1: #{tpu_custom_call.1} parent=0
    #allocation2 [shape = 'u8[8192]{0}', space=vmem, size = 0x2000, scoped, tag = 'output window, operand 0, single buffered']
    #allocation3 [shape = 's32[1]{0}', space=sflag, size = 0x4, scoped, tag = 'scoped memory for tpu_custom_call.1']
    %19 = vsyncpa [#allocation3], 0
    // Predicated region
    $region2: #{tpu_custom_call.1} parent=1 // pred_check
      _
    $region3: #{tpu_custom_call.1} parent=1 // pred_check_branch
      %21 = sbr.rel (0) target = $region5
    $region4: #{tpu_custom_call.1} parent=1 // pred_region
      _
    $region5: #{tpu_custom_call.1} parent=1 // pred_fallthru
      _
    // Predicated region
    $region6: #{tpu_custom_call.1} parent=1 // pred_check
      _
    $region7: #{tpu_custom_call.1} parent=1 // pred_check_branch
      %23 = sbr.rel (0) target = $region9
    $region8: #{tpu_custom_call.1} parent=1 // pred_region
      _
    $region9: #{tpu_custom_call.1} parent=1 // pred_fallthru
      _
    // Predicated region
    $region10: #{tpu_custom_call.1} parent=1 // pred_check
      _
    $region11: #{tpu_custom_call.1} parent=1 // pred_check_branch
      %25 = sbr.rel (0) target = $region13
    $region12: #{tpu_custom_call.1} parent=1 // pred_region
      _
    $region13: #{tpu_custom_call.1} parent=1 // pred_fallthru
      _
    // Predicated region
    $region14: #{tpu_custom_call.1} parent=1 // pred_check
      _
    $region15: #{tpu_custom_call.1} parent=1 // pred_check_branch
      %27 = sbr.rel (0) target = $region17
    $region16: #{tpu_custom_call.1} parent=1 // pred_region
      _
    $region17: #{tpu_custom_call.1} parent=1 // pred_fallthru
      _
    // Predicated region
    $region18: #{tpu_custom_call.1} parent=1 // pred_check
      _
    $region19: #{tpu_custom_call.1} parent=1 // pred_check_branch
      %29 = sbr.rel (0) target = $region21
    $region20: #{tpu_custom_call.1} parent=1 // pred_region
      _
    $region21: #{tpu_custom_call.1} parent=1 // pred_fallthru
      _
    // Predicated region
    $region22: #{tpu_custom_call.1} parent=1 // pred_check
      _
    $region23: #{tpu_custom_call.1} parent=1 // pred_check_branch
      %31 = sbr.rel (0) target = $region25
    $region24: #{tpu_custom_call.1} parent=1 // pred_region
      _
    $region25: #{tpu_custom_call.1} parent=1 // pred_fallthru
      _
    // Predicated region
    $region26: #{tpu_custom_call.1} parent=1 // pred_check
      _
    $region27: #{tpu_custom_call.1} parent=1 // pred_check_branch
      %33 = sbr.rel (0) target = $region29
    $region28: #{tpu_custom_call.1} parent=1 // pred_region
      _
    $region29: #{tpu_custom_call.1} parent=1 // pred_fallthru
      _
    // Predicated region
    $region30: #{tpu_custom_call.1} parent=1 // pred_check
      _
    $region31: #{tpu_custom_call.1} parent=1 // pred_check_branch
      %35 = sbr.rel (0) target = $region33
    $region32: #{tpu_custom_call.1} parent=1 // pred_region
      _
    $region33: #{tpu_custom_call.1} parent=1 // pred_fallthru
      _
    // Predicated region
    $region34: #{tpu_custom_call.1} parent=1 // pred_check
      _
    $region35: #{tpu_custom_call.1} parent=1 // pred_check_branch
      %37 = sbr.rel (0) target = $region37
    $region36: #{tpu_custom_call.1} parent=1 // pred_region
      _
    $region37: #{tpu_custom_call.1} parent=1 // pred_fallthru
      _
    // Predicated region
    $region38: #{tpu_custom_call.1} parent=1 // pred_check
      _
    $region39: #{tpu_custom_call.1} parent=1 // pred_check_branch
      %39 = sbr.rel (0) target = $region41
    $region40: #{tpu_custom_call.1} parent=1 // pred_region
      _
    $region41: #{tpu_custom_call.1} parent=1 // pred_fallthru
      _
    // Predicated region
    $region42: #{tpu_custom_call.1} parent=1 // pred_check
      _
    $region43: #{tpu_custom_call.1} parent=1 // pred_check_branch
      %41 = sbr.rel (0) target = $region45
    $region44: #{tpu_custom_call.1} parent=1 // pred_region
      _
    $region45: #{tpu_custom_call.1} parent=1 // pred_fallthru
      _
    // Predicated region
    $region46: #{tpu_custom_call.1} parent=1 // pred_check
      _
    $region47: #{tpu_custom_call.1} parent=1 // pred_check_branch
      %43 = sbr.rel (0) target = $region49
    $region48: #{tpu_custom_call.1} parent=1 // pred_region
      _
    $region49: #{tpu_custom_call.1} parent=1 // pred_fallthru
      _
    // Predicated region
    $region50: #{tpu_custom_call.1} parent=1 // pred_check
      _
    $region51: #{tpu_custom_call.1} parent=1 // pred_check_branch
      %45 = sbr.rel (0) target = $region53
    $region52: #{tpu_custom_call.1} parent=1 // pred_region
      _
    $region53: #{tpu_custom_call.1} parent=1 // pred_fallthru
      _
    // Predicated region
    $region54: #{tpu_custom_call.1} parent=1 // pred_check
      _
    $region55: #{tpu_custom_call.1} parent=1 // pred_check_branch
      %47 = sbr.rel (0) target = $region57
    $region56: #{tpu_custom_call.1} parent=1 // pred_region
      _
    $region57: #{tpu_custom_call.1} parent=1 // pred_fallthru
      _
    %v49 = vlaneseq
    %v50 = vand.u32 %v49, 127
    %v51 = vld [vmem:[%s0] sm:$0xff]
    %v52 = vld [vmem:[%s0 + $0x8] sm:$0xff]
    %53 = vset.pattern.permute.xlu0 0
    %54 = vperm.xlu0 %53, %v51
    %v55 = vpop.permute.xlu0 %54
    %56 = vset.pattern.permute.xlu0 0
    %57 = vperm.xlu0 %56, %v52
    %v58 = vpop.permute.xlu0 %57
    %vm59 = vcmp.eq.s32.totalorder %v50, %v55
    %vm60 = vcmp.eq.s32.totalorder %v50, %v58
    %v61 = vsel %vm59, 1, 0
    %v62 = vsel %vm60, 1, 0
    %v63 = vcvt.s32.f32 %v61
    %v64 = vcvt.s32.f32 %v62
    %v65 = vpack.c.bf16 %v64, %v63
    %v66 = vld [vmem:[%s7] sm:$0xf]
    %v67 = vld [vmem:[%s7 + $0x4] sm:$0xf]
    %v68 = vld [vmem:[%s7 + $0x8] sm:$0xf]
    %v69 = vld [vmem:[%s7 + $0xc] sm:$0xf]
    %v70 = vld [vmem:[%s7 + $0x10] sm:$0xf]
    %v71 = vld [vmem:[%s7 + $0x14] sm:$0xf]
    %v72 = vld [vmem:[%s7 + $0x18] sm:$0xf]
    %v73 = vld [vmem:[%s7 + $0x1c] sm:$0xf]
    %v74 = vld [vmem:[%s7 + $0x20] sm:$0xf]
    %v75 = vld [vmem:[%s7 + $0x24] sm:$0xf]
    %v76 = vld [vmem:[%s7 + $0x28] sm:$0xf]
    %v77 = vld [vmem:[%s7 + $0x2c] sm:$0xf]
    %v78 = vld [vmem:[%s7 + $0x30] sm:$0xf]
    %v79 = vld [vmem:[%s7 + $0x34] sm:$0xf]
    %v80 = vld [vmem:[%s7 + $0x38] sm:$0xf]
    %v81 = vld [vmem:[%s7 + $0x3c] sm:$0x7]
    %v98 = vunpack.c.l.b16 %v66
    %v99 = vunpack.c.l.b16 %v67
    %v100 = vunpack.c.l.b16 %v68
    %v101 = vunpack.c.l.b16 %v69
    %v102 = vunpack.c.l.b16 %v70
    %v103 = vunpack.c.l.b16 %v71
    %v104 = vunpack.c.l.b16 %v72
    %v105 = vunpack.c.l.b16 %v73
    %v106 = vunpack.c.l.b16 %v74
    %v107 = vunpack.c.l.b16 %v75
    %v108 = vunpack.c.l.b16 %v76
    %v109 = vunpack.c.l.b16 %v77
    %v110 = vunpack.c.l.b16 %v78
    %v111 = vunpack.c.l.b16 %v79
    %v112 = vunpack.c.l.b16 %v80
    %v113 = vunpack.c.l.b16 %v81
    %v114 = vpack.c.b16 %v99, %v98
    %v115 = vpack.c.b16 %v101, %v100
    %v116 = vpack.c.b16 %v103, %v102
    %v117 = vpack.c.b16 %v105, %v104
    %v118 = vpack.c.b16 %v107, %v106
    %v119 = vpack.c.b16 %v109, %v108
    %v120 = vpack.c.b16 %v111, %v110
    %v121 = vpack.c.b16 %v113, %v112
    %vm129 = vcmask 1022976
    %v131 = vsel %vm129, %v65, 0
    %vm133 = vcmask 1045504
    %vm134 = vcmask 1046528
    %v135 = vsel %vm133, 4294967295, 65535
    %v136 = vsel %vm134, %v135, 0
    %v138 = vand.u32 %v121, %v136
    %140 = vmatpush.bf16.msra.mxu0 %v138
    %141 = vmatpush.bf16.msra.mxu0 %v120
    %142 = vmatpush.bf16.msra.mxu0 %v119
    %143 = vmatpush.bf16.msra.mxu0 %v118
    %144 = vmatpush.bf16.msra.mxu0 %v117
    %145 = vmatpush.bf16.msra.mxu0 %v116
    %146 = vmatpush.bf16.msra.mxu0 %v115
    %147 = vmatpush.bf16.msra.mxu0 %v114
    %148 = vmatmul.bf16.gmra.mxu0 %v131
    %v149 = vpop.f32.mrf.mxu0
    %v150 = vadd.f32 0.0, %v149
    %v151 = vpop.f32.mrf.mxu0
    %v152 = vadd.f32 0.0, %v151
    %153 = vdwg.mxu0
    %v154 = vld [vmem:[%s2] sm:$0xff]
    %v155 = vld [vmem:[%s2 + $0x8] sm:$0xff]
    %v156 = vld [vmem:[%s2 + $0x10] sm:$0xff]
    %v157 = vld [vmem:[%s2 + $0x18] sm:$0xff]
    %v158 = vld [vmem:[%s2 + $0x20] sm:$0xff]
    %v159 = vld [vmem:[%s2 + $0x28] sm:$0xff]
    %v160 = vld [vmem:[%s2 + $0x30] sm:$0xff]
    %v161 = vld [vmem:[%s2 + $0x38] sm:$0xff]
    %v162 = vld [vmem:[%s2 + $0x40] sm:$0xff]
    %v163 = vld [vmem:[%s2 + $0x48] sm:$0xff]
    %v164 = vld [vmem:[%s2 + $0x50] sm:$0xff]
    %v165 = vld [vmem:[%s2 + $0x58] sm:$0xff]
    %v166 = vld [vmem:[%s2 + $0x60] sm:$0xff]
    %v167 = vld [vmem:[%s2 + $0x68] sm:$0xff]
    %v168 = vld [vmem:[%s3] sm:$0x1]
    %170 = vset.pattern.permute.xlu0 0
    %171 = vperm.xlu0 %170, %v154
    %v172 = vpop.permute.xlu0 %171
    %175 = vset.pattern.permute.xlu0 0
    %176 = vperm.xlu0 %175, %v155
    %v177 = vpop.permute.xlu0 %176
    %180 = vset.pattern.permute.xlu0 0
    %181 = vperm.xlu0 %180, %v156
    %v182 = vpop.permute.xlu0 %181
    %185 = vset.pattern.permute.xlu0 0
    %186 = vperm.xlu0 %185, %v157
    %v187 = vpop.permute.xlu0 %186
    %190 = vset.pattern.permute.xlu0 0
    %191 = vperm.xlu0 %190, %v158
    %v192 = vpop.permute.xlu0 %191
    %195 = vset.pattern.permute.xlu0 0
    %196 = vperm.xlu0 %195, %v159
    %v197 = vpop.permute.xlu0 %196
    %200 = vset.pattern.permute.xlu0 0
    %201 = vperm.xlu0 %200, %v160
    %v202 = vpop.permute.xlu0 %201
    %205 = vset.pattern.permute.xlu0 0
    %206 = vperm.xlu0 %205, %v161
    %v207 = vpop.permute.xlu0 %206
    %210 = vset.pattern.permute.xlu0 0
    %211 = vperm.xlu0 %210, %v162
    %v212 = vpop.permute.xlu0 %211
    %215 = vset.pattern.permute.xlu0 0
    %216 = vperm.xlu0 %215, %v163
    %v217 = vpop.permute.xlu0 %216
    %220 = vset.pattern.permute.xlu0 0
    %221 = vperm.xlu0 %220, %v164
    %v222 = vpop.permute.xlu0 %221
    %225 = vset.pattern.permute.xlu0 0
    %226 = vperm.xlu0 %225, %v165
    %v227 = vpop.permute.xlu0 %226
    %230 = vset.pattern.permute.xlu0 0
    %231 = vperm.xlu0 %230, %v166
    %v232 = vpop.permute.xlu0 %231
    %235 = vset.pattern.permute.xlu0 0
    %236 = vperm.xlu0 %235, %v167
    %v237 = vpop.permute.xlu0 %236
    %v240 = vperm.slane %v168, 0
    %v242 = vsub.f32 %v172, %v240
    %v243 = vsub.f32 %v177, %v240
    %v244 = vsub.f32 %v182, %v240
    %v245 = vsub.f32 %v187, %v240
    %v246 = vsub.f32 %v192, %v240
    %v247 = vsub.f32 %v197, %v240
    %v248 = vsub.f32 %v202, %v240
    %v249 = vsub.f32 %v207, %v240
    %v250 = vsub.f32 %v212, %v240
    %v251 = vsub.f32 %v217, %v240
    %v252 = vsub.f32 %v222, %v240
    %v253 = vsub.f32 %v227, %v240
    %v254 = vsub.f32 %v232, %v240
    %v255 = vsub.f32 %v237, %v240
    %v256 = vmul.f32 %v242, %v242
    %v257 = vmul.f32 %v243, %v243
    %v258 = vmul.f32 %v244, %v244
    %v259 = vmul.f32 %v245, %v245
    %v260 = vmul.f32 %v246, %v246
    %v261 = vmul.f32 %v247, %v247
    %v262 = vmul.f32 %v248, %v248
    %v263 = vmul.f32 %v249, %v249
    %v264 = vmul.f32 %v250, %v250
    %v265 = vmul.f32 %v251, %v251
    %v266 = vmul.f32 %v252, %v252
    %v267 = vmul.f32 %v253, %v253
    %v268 = vmul.f32 %v254, %v254
    %v269 = vmul.f32 %v255, %v255
    %v270 = vsub.f32 0.0, %v256
    %v271 = vsub.f32 0.0, %v257
    %v272 = vsub.f32 0.0, %v258
    %v273 = vsub.f32 0.0, %v259
    %v274 = vsub.f32 0.0, %v260
    %v275 = vsub.f32 0.0, %v261
    %v276 = vsub.f32 0.0, %v262
    %v277 = vsub.f32 0.0, %v263
    %v278 = vsub.f32 0.0, %v264
    %v279 = vsub.f32 0.0, %v265
    %v280 = vsub.f32 0.0, %v266
    %v281 = vsub.f32 0.0, %v267
    %v282 = vsub.f32 0.0, %v268
    %v283 = vsub.f32 0.0, %v269
    %v284 = vmul.f32 %v270, 4.0
    %v285 = vmul.f32 %v271, 4.0
    %v286 = vmul.f32 %v272, 4.0
    %v287 = vmul.f32 %v273, 4.0
    %v288 = vmul.f32 %v274, 4.0
    %v289 = vmul.f32 %v275, 4.0
    %v290 = vmul.f32 %v276, 4.0
    %v291 = vmul.f32 %v277, 4.0
    %v292 = vmul.f32 %v278, 4.0
    %v293 = vmul.f32 %v279, 4.0
    %v294 = vmul.f32 %v280, 4.0
    %v295 = vmul.f32 %v281, 4.0
    %v296 = vmul.f32 %v282, 4.0
    %v297 = vmul.f32 %v283, 4.0
    %v298 = vmul.f32 %v284, 1.442695
    %v299 = vpow.pop %v298
    %v300 = vmul.f32 %v285, 1.442695
    %v301 = vpow.pop %v300
    %v302 = vmul.f32 %v286, 1.442695
    %v303 = vpow.pop %v302
    %v304 = vmul.f32 %v287, 1.442695
    %v305 = vpow.pop %v304
    %v306 = vmul.f32 %v288, 1.442695
    %v307 = vpow.pop %v306
    %v308 = vmul.f32 %v289, 1.442695
    %v309 = vpow.pop %v308
    %v310 = vmul.f32 %v290, 1.442695
    %v311 = vpow.pop %v310
    %v312 = vmul.f32 %v291, 1.442695
    %v313 = vpow.pop %v312
    %v314 = vmul.f32 %v292, 1.442695
    %v315 = vpow.pop %v314
    %v316 = vmul.f32 %v293, 1.442695
    %v317 = vpow.pop %v316
    %v318 = vmul.f32 %v294, 1.442695
    %v319 = vpow.pop %v318
    %v320 = vmul.f32 %v295, 1.442695
    %v321 = vpow.pop %v320
    %v322 = vmul.f32 %v296, 1.442695
    %v323 = vpow.pop %v322
    %v324 = vmul.f32 %v297, 1.442695
    %v325 = vpow.pop %v324
    %v326 = vpack.c.bf16 %v301, %v299
    %v327 = vpack.c.bf16 %v305, %v303
    %v328 = vpack.c.bf16 %v309, %v307
    %v329 = vpack.c.bf16 %v313, %v311
    %v330 = vpack.c.bf16 %v317, %v315
    %v331 = vpack.c.bf16 %v321, %v319
    %v332 = vpack.c.bf16 %v325, %v323
    %v333 = vld [vmem:[%s4] sm:$0xff]
    %v334 = vld [vmem:[%s4 + $0x8] sm:$0xff]
    %v335 = vld [vmem:[%s4 + $0x10] sm:$0xff]
    %v336 = vld [vmem:[%s4 + $0x18] sm:$0xff]
    %v337 = vld [vmem:[%s4 + $0x20] sm:$0xff]
    %v338 = vld [vmem:[%s4 + $0x28] sm:$0xff]
    %v339 = vld [vmem:[%s4 + $0x30] sm:$0xff]
    %v340 = vld [vmem:[%s4 + $0x38] sm:$0xff]
    %v341 = vld [vmem:[%s4 + $0x40] sm:$0xff]
    %v342 = vld [vmem:[%s4 + $0x48] sm:$0xff]
    %v343 = vld [vmem:[%s4 + $0x50] sm:$0xff]
    %v344 = vld [vmem:[%s4 + $0x58] sm:$0xff]
    %v345 = vld [vmem:[%s4 + $0x60] sm:$0xff]
    %v346 = vld [vmem:[%s4 + $0x68] sm:$0xff]
    %347 = vset.pattern.permute.xlu0 0
    %348 = vperm.xlu0 %347, %v333
    %v349 = vpop.permute.xlu0 %348
    %350 = vset.pattern.permute.xlu0 0
    %351 = vperm.xlu0 %350, %v334
    %v352 = vpop.permute.xlu0 %351
    %353 = vset.pattern.permute.xlu0 0
    %354 = vperm.xlu0 %353, %v335
    %v355 = vpop.permute.xlu0 %354
    %356 = vset.pattern.permute.xlu0 0
    %357 = vperm.xlu0 %356, %v336
    %v358 = vpop.permute.xlu0 %357
    %359 = vset.pattern.permute.xlu0 0
    %360 = vperm.xlu0 %359, %v337
    %v361 = vpop.permute.xlu0 %360
    %362 = vset.pattern.permute.xlu0 0
    %363 = vperm.xlu0 %362, %v338
    %v364 = vpop.permute.xlu0 %363
    %365 = vset.pattern.permute.xlu0 0
    %366 = vperm.xlu0 %365, %v339
    %v367 = vpop.permute.xlu0 %366
    %368 = vset.pattern.permute.xlu0 0
    %369 = vperm.xlu0 %368, %v340
    %v370 = vpop.permute.xlu0 %369
    %371 = vset.pattern.permute.xlu0 0
    %372 = vperm.xlu0 %371, %v341
    %v373 = vpop.permute.xlu0 %372
    %374 = vset.pattern.permute.xlu0 0
    %375 = vperm.xlu0 %374, %v342
    %v376 = vpop.permute.xlu0 %375
    %377 = vset.pattern.permute.xlu0 0
    %378 = vperm.xlu0 %377, %v343
    %v379 = vpop.permute.xlu0 %378
    %380 = vset.pattern.permute.xlu0 0
    %381 = vperm.xlu0 %380, %v344
    %v382 = vpop.permute.xlu0 %381
    %383 = vset.pattern.permute.xlu0 0
    %384 = vperm.xlu0 %383, %v345
    %v385 = vpop.permute.xlu0 %384
    %386 = vset.pattern.permute.xlu0 0
    %387 = vperm.xlu0 %386, %v346
    %v388 = vpop.permute.xlu0 %387
    %vm389 = vcmp.eq.s32.totalorder %v50, %v349
    %vm390 = vcmp.eq.s32.totalorder %v50, %v352
    %vm391 = vcmp.eq.s32.totalorder %v50, %v355
    %vm392 = vcmp.eq.s32.totalorder %v50, %v358
    %vm393 = vcmp.eq.s32.totalorder %v50, %v361
    %vm394 = vcmp.eq.s32.totalorder %v50, %v364
    %vm395 = vcmp.eq.s32.totalorder %v50, %v367
    %vm396 = vcmp.eq.s32.totalorder %v50, %v370
    %vm397 = vcmp.eq.s32.totalorder %v50, %v373
    %vm398 = vcmp.eq.s32.totalorder %v50, %v376
    %vm399 = vcmp.eq.s32.totalorder %v50, %v379
    %vm400 = vcmp.eq.s32.totalorder %v50, %v382
    %vm401 = vcmp.eq.s32.totalorder %v50, %v385
    %vm402 = vcmp.eq.s32.totalorder %v50, %v388
    %v403 = vsel %vm389, 1, 0
    %v404 = vsel %vm390, 1, 0
    %v405 = vsel %vm391, 1, 0
    %v406 = vsel %vm392, 1, 0
    %v407 = vsel %vm393, 1, 0
    %v408 = vsel %vm394, 1, 0
    %v409 = vsel %vm395, 1, 0
    %v410 = vsel %vm396, 1, 0
    %v411 = vsel %vm397, 1, 0
    %v412 = vsel %vm398, 1, 0
    %v413 = vsel %vm399, 1, 0
    %v414 = vsel %vm400, 1, 0
    %v415 = vsel %vm401, 1, 0
    %v416 = vsel %vm402, 1, 0
    %v417 = vcvt.s32.f32 %v403
    %v418 = vcvt.s32.f32 %v404
    %v419 = vcvt.s32.f32 %v405
    %v420 = vcvt.s32.f32 %v406
    %v421 = vcvt.s32.f32 %v407
    %v422 = vcvt.s32.f32 %v408
    %v423 = vcvt.s32.f32 %v409
    %v424 = vcvt.s32.f32 %v410
    %v425 = vcvt.s32.f32 %v411
    %v426 = vcvt.s32.f32 %v412
    %v427 = vcvt.s32.f32 %v413
    %v428 = vcvt.s32.f32 %v414
    %v429 = vcvt.s32.f32 %v415
    %v430 = vcvt.s32.f32 %v416
    %v431 = vpack.c.bf16 %v418, %v417
    %v432 = vpack.c.bf16 %v420, %v419
    %v433 = vpack.c.bf16 %v422, %v421
    %v434 = vpack.c.bf16 %v424, %v423
    %v435 = vpack.c.bf16 %v426, %v425
    %v436 = vpack.c.bf16 %v428, %v427
    %v437 = vpack.c.bf16 %v430, %v429
    %v438 = vld [vmem:[%s5] sm:$0xff]
    %v439 = vld [vmem:[%s5 + $0x8] sm:$0xff]
    %v440 = vld [vmem:[%s5 + $0x10] sm:$0xff]
    %v441 = vld [vmem:[%s5 + $0x18] sm:$0xff]
    %v442 = vld [vmem:[%s5 + $0x20] sm:$0xff]
    %v443 = vld [vmem:[%s5 + $0x28] sm:$0xff]
    %v444 = vld [vmem:[%s5 + $0x30] sm:$0xff]
    %v445 = vld [vmem:[%s5 + $0x38] sm:$0xff]
    %v446 = vld [vmem:[%s5 + $0x40] sm:$0xff]
    %v447 = vld [vmem:[%s5 + $0x48] sm:$0xff]
    %v448 = vld [vmem:[%s5 + $0x50] sm:$0xff]
    %v449 = vld [vmem:[%s5 + $0x58] sm:$0xff]
    %v450 = vld [vmem:[%s5 + $0x60] sm:$0xff]
    %v451 = vld [vmem:[%s5 + $0x68] sm:$0xff]
    %452 = vset.pattern.permute.xlu0 0
    %453 = vperm.xlu0 %452, %v438
    %v454 = vpop.permute.xlu0 %453
    %455 = vset.pattern.permute.xlu0 0
    %456 = vperm.xlu0 %455, %v439
    %v457 = vpop.permute.xlu0 %456
    %458 = vset.pattern.permute.xlu0 0
    %459 = vperm.xlu0 %458, %v440
    %v460 = vpop.permute.xlu0 %459
    %461 = vset.pattern.permute.xlu0 0
    %462 = vperm.xlu0 %461, %v441
    %v463 = vpop.permute.xlu0 %462
    %464 = vset.pattern.permute.xlu0 0
    %465 = vperm.xlu0 %464, %v442
    %v466 = vpop.permute.xlu0 %465
    %467 = vset.pattern.permute.xlu0 0
    %468 = vperm.xlu0 %467, %v443
    %v469 = vpop.permute.xlu0 %468
    %470 = vset.pattern.permute.xlu0 0
    %471 = vperm.xlu0 %470, %v444
    %v472 = vpop.permute.xlu0 %471
    %473 = vset.pattern.permute.xlu0 0
    %474 = vperm.xlu0 %473, %v445
    %v475 = vpop.permute.xlu0 %474
    %476 = vset.pattern.permute.xlu0 0
    %477 = vperm.xlu0 %476, %v446
    %v478 = vpop.permute.xlu0 %477
    %479 = vset.pattern.permute.xlu0 0
    %480 = vperm.xlu0 %479, %v447
    %v481 = vpop.permute.xlu0 %480
    %482 = vset.pattern.permute.xlu0 0
    %483 = vperm.xlu0 %482, %v448
    %v484 = vpop.permute.xlu0 %483
    %485 = vset.pattern.permute.xlu0 0
    %486 = vperm.xlu0 %485, %v449
    %v487 = vpop.permute.xlu0 %486
    %488 = vset.pattern.permute.xlu0 0
    %489 = vperm.xlu0 %488, %v450
    %v490 = vpop.permute.xlu0 %489
    %491 = vset.pattern.permute.xlu0 0
    %492 = vperm.xlu0 %491, %v451
    %v493 = vpop.permute.xlu0 %492
    %vm494 = vcmp.eq.s32.totalorder %v50, %v454
    %vm495 = vcmp.eq.s32.totalorder %v50, %v457
    %vm496 = vcmp.eq.s32.totalorder %v50, %v460
    %vm497 = vcmp.eq.s32.totalorder %v50, %v463
    %vm498 = vcmp.eq.s32.totalorder %v50, %v466
    %vm499 = vcmp.eq.s32.totalorder %v50, %v469
    %vm500 = vcmp.eq.s32.totalorder %v50, %v472
    %vm501 = vcmp.eq.s32.totalorder %v50, %v475
    %vm502 = vcmp.eq.s32.totalorder %v50, %v478
    %vm503 = vcmp.eq.s32.totalorder %v50, %v481
    %vm504 = vcmp.eq.s32.totalorder %v50, %v484
    %vm505 = vcmp.eq.s32.totalorder %v50, %v487
    %vm506 = vcmp.eq.s32.totalorder %v50, %v490
    %vm507 = vcmp.eq.s32.totalorder %v50, %v493
    %v508 = vsel %vm494, 1, 0
    %v509 = vsel %vm495, 1, 0
    %v510 = vsel %vm496, 1, 0
    %v511 = vsel %vm497, 1, 0
    %v512 = vsel %vm498, 1, 0
    %v513 = vsel %vm499, 1, 0
    %v514 = vsel %vm500, 1, 0
    %v515 = vsel %vm501, 1, 0
    %v516 = vsel %vm502, 1, 0
    %v517 = vsel %vm503, 1, 0
    %v518 = vsel %vm504, 1, 0
    %v519 = vsel %vm505, 1, 0
    %v520 = vsel %vm506, 1, 0
    %v521 = vsel %vm507, 1, 0
    %v522 = vcvt.s32.f32 %v508
    %v523 = vcvt.s32.f32 %v509
    %v524 = vcvt.s32.f32 %v510
    %v525 = vcvt.s32.f32 %v511
    %v526 = vcvt.s32.f32 %v512
    %v527 = vcvt.s32.f32 %v513
    %v528 = vcvt.s32.f32 %v514
    %v529 = vcvt.s32.f32 %v515
    %v530 = vcvt.s32.f32 %v516
    %v531 = vcvt.s32.f32 %v517
    %v532 = vcvt.s32.f32 %v518
    %v533 = vcvt.s32.f32 %v519
    %v534 = vcvt.s32.f32 %v520
    %v535 = vcvt.s32.f32 %v521
    %v536 = vpack.c.bf16 %v523, %v522
    %v537 = vpack.c.bf16 %v525, %v524
    %v538 = vpack.c.bf16 %v527, %v526
    %v539 = vpack.c.bf16 %v529, %v528
    %v540 = vpack.c.bf16 %v531, %v530
    %v541 = vpack.c.bf16 %v533, %v532
    %v542 = vpack.c.bf16 %v535, %v534
    %v543 = vlaneseq
    %v544 = vshrl.u32 %v543, 7
    %v545 = vadd.s32 %v544, 8
    %v546 = vld [vmem:[%s6] sm:$0x1]
    %v547 = vperm.slane %v546, 0
    %vm548 = vcmp.eq.s32.totalorder %v544, %v547
    %vm549 = vcmp.eq.s32.totalorder %v545, %v547
    %v550 = vsel %vm548, 1, 0
    %v551 = vsel %vm549, 1, 0
    %v552 = vcvt.s32.f32 %v550
    %v553 = vcvt.s32.f32 %v551
    %v554 = vpack.c.bf16 %v553, %v552
    %v555 = vpack.c.bf16 %v152, %v150
    %vm556 = vcmask 130048
    %v558 = vsel %vm556, %v536, 0
    %v561 = vsel %vm556, %v537, 0
    %v564 = vsel %vm556, %v538, 0
    %v567 = vsel %vm556, %v539, 0
    %v570 = vsel %vm556, %v540, 0
    %v573 = vsel %vm556, %v541, 0
    %v576 = vsel %vm556, %v542, 0
    %578 = vmatpush.bf16.msra.mxu0 0
    %579 = vmatpush.bf16.msra.mxu0 0
    %580 = vmatpush.bf16.msra.mxu0 0
    %581 = vmatpush.bf16.msra.mxu0 0
    %582 = vmatpush.bf16.msra.mxu0 0
    %583 = vmatpush.bf16.msra.mxu0 0
    %584 = vmatpush.bf16.msra.mxu0 0
    %585 = vmatpush.bf16.msra.mxu0 %v555
    %586 = vmatmul.bf16.gmra.mxu0 %v558
    %v587 = vpop.f32.mrf.mxu0
    %v588 = vadd.f32 0.0, %v587
    %v589 = vpop.f32.mrf.mxu0
    %v590 = vadd.f32 0.0, %v589
    %591 = vmatmul.bf16.gmra.mxu0 %v561
    %v592 = vpop.f32.mrf.mxu0
    %v593 = vadd.f32 0.0, %v592
    %v594 = vpop.f32.mrf.mxu0
    %v595 = vadd.f32 0.0, %v594
    %596 = vmatmul.bf16.gmra.mxu0 %v564
    %v597 = vpop.f32.mrf.mxu0
    %v598 = vadd.f32 0.0, %v597
    %v599 = vpop.f32.mrf.mxu0
    %v600 = vadd.f32 0.0, %v599
    %601 = vmatmul.bf16.gmra.mxu0 %v567
    %v602 = vpop.f32.mrf.mxu0
    %v603 = vadd.f32 0.0, %v602
    %v604 = vpop.f32.mrf.mxu0
    %v605 = vadd.f32 0.0, %v604
    %606 = vmatmul.bf16.gmra.mxu0 %v570
    %v607 = vpop.f32.mrf.mxu0
    %v608 = vadd.f32 0.0, %v607
    %v609 = vpop.f32.mrf.mxu0
    %v610 = vadd.f32 0.0, %v609
    %611 = vmatmul.bf16.gmra.mxu0 %v573
    %v612 = vpop.f32.mrf.mxu0
    %v613 = vadd.f32 0.0, %v612
    %v614 = vpop.f32.mrf.mxu0
    %v615 = vadd.f32 0.0, %v614
    %616 = vmatmul.bf16.gmra.mxu0 %v576
    %v617 = vpop.f32.mrf.mxu0
    %v618 = vadd.f32 0.0, %v617
    %v619 = vpop.f32.mrf.mxu0
    %v620 = vadd.f32 0.0, %v619
    %621 = vdwg.mxu0
    %v623 = vsel %vm556, %v431, 0
    %v626 = vsel %vm556, %v432, 0
    %v629 = vsel %vm556, %v433, 0
    %v632 = vsel %vm556, %v434, 0
    %v635 = vsel %vm556, %v435, 0
    %v638 = vsel %vm556, %v436, 0
    %v641 = vsel %vm556, %v437, 0
    %643 = vmatpush.bf16.msra.mxu0 0
    %644 = vmatpush.bf16.msra.mxu0 0
    %645 = vmatpush.bf16.msra.mxu0 0
    %646 = vmatpush.bf16.msra.mxu0 0
    %647 = vmatpush.bf16.msra.mxu0 0
    %648 = vmatpush.bf16.msra.mxu0 0
    %649 = vmatpush.bf16.msra.mxu0 0
    %650 = vmatpush.bf16.msra.mxu0 %v555
    %651 = vmatmul.bf16.gmra.mxu0 %v623
    %v652 = vpop.f32.mrf.mxu0
    %v653 = vadd.f32 0.0, %v652
    %v654 = vpop.f32.mrf.mxu0
    %v655 = vadd.f32 0.0, %v654
    %656 = vmatmul.bf16.gmra.mxu0 %v626
    %v657 = vpop.f32.mrf.mxu0
    %v658 = vadd.f32 0.0, %v657
    %v659 = vpop.f32.mrf.mxu0
    %v660 = vadd.f32 0.0, %v659
    %661 = vmatmul.bf16.gmra.mxu0 %v629
    %v662 = vpop.f32.mrf.mxu0
    %v663 = vadd.f32 0.0, %v662
    %v664 = vpop.f32.mrf.mxu0
    %v665 = vadd.f32 0.0, %v664
    %666 = vmatmul.bf16.gmra.mxu0 %v632
    %v667 = vpop.f32.mrf.mxu0
    %v668 = vadd.f32 0.0, %v667
    %v669 = vpop.f32.mrf.mxu0
    %v670 = vadd.f32 0.0, %v669
    %671 = vmatmul.bf16.gmra.mxu0 %v635
    %v672 = vpop.f32.mrf.mxu0
    %v673 = vadd.f32 0.0, %v672
    %v674 = vpop.f32.mrf.mxu0
    %v675 = vadd.f32 0.0, %v674
    %676 = vmatmul.bf16.gmra.mxu0 %v638
    %v677 = vpop.f32.mrf.mxu0
    %v678 = vadd.f32 0.0, %v677
    %v679 = vpop.f32.mrf.mxu0
    %v680 = vadd.f32 0.0, %v679
    %681 = vmatmul.bf16.gmra.mxu0 %v641
    %v682 = vpop.f32.mrf.mxu0
    %v683 = vadd.f32 0.0, %v682
    %v684 = vpop.f32.mrf.mxu0
    %v685 = vadd.f32 0.0, %v684
    %686 = vdwg.mxu0
    %v687 = vld [vmem:[%s8] sm:$0xf]
    %v688 = vld [vmem:[%s8 + $0x4] sm:$0xf]
    %v689 = vld [vmem:[%s8 + $0x8] sm:$0xf]
    %v690 = vld [vmem:[%s8 + $0xc] sm:$0xf]
    %v691 = vld [vmem:[%s8 + $0x10] sm:$0xf]
    %v692 = vld [vmem:[%s8 + $0x14] sm:$0xf]
    %v693 = vld [vmem:[%s8 + $0x18] sm:$0xf]
    %v694 = vld [vmem:[%s8 + $0x1c] sm:$0xf]
    %v695 = vld [vmem:[%s8 + $0x20] sm:$0xf]
    %v696 = vld [vmem:[%s8 + $0x24] sm:$0xf]
    %v697 = vpack.c.bf16 %v590, %v588
    %v698 = vpack.c.bf16 %v595, %v593
    %v699 = vpack.c.bf16 %v600, %v598
    %v700 = vpack.c.bf16 %v605, %v603
    %v701 = vpack.c.bf16 %v610, %v608
    %v702 = vpack.c.bf16 %v615, %v613
    %v703 = vpack.c.bf16 %v620, %v618
    %v704 = vpack.c.bf16 %v655, %v653
    %v705 = vpack.c.bf16 %v660, %v658
    %v706 = vpack.c.bf16 %v665, %v663
    %v707 = vpack.c.bf16 %v670, %v668
    %v708 = vpack.c.bf16 %v675, %v673
    %v709 = vpack.c.bf16 %v680, %v678
    %v710 = vpack.c.bf16 %v685, %v683
    %v715 = vunpack.c.l.b16 %v691
    %v716 = vunpack.c.l.b16 %v692
    %v717 = vunpack.c.l.b16 %v693
    %v718 = vunpack.c.l.b16 %v694
    %v719 = vpack.c.b16 %v716, %v715
    %v720 = vpack.c.b16 %v718, %v717
    %vm723 = vcmask 261120
    %v725 = vsel %vm723, %v704, 0
    %v728 = vsel %vm723, %v705, 0
    %v731 = vsel %vm723, %v706, 0
    %v734 = vsel %vm723, %v707, 0
    %v737 = vsel %vm723, %v708, 0
    %v740 = vsel %vm723, %v709, 0
    %v743 = vsel %vm723, %v710, 0
    %745 = vmatpush.bf16.msra.mxu0 0
    %746 = vmatpush.bf16.msra.mxu0 0
    %747 = vmatpush.bf16.msra.mxu0 0
    %748 = vmatpush.bf16.msra.mxu0 0
    %749 = vmatpush.bf16.msra.mxu0 0
    %750 = vmatpush.bf16.msra.mxu0 0
    %751 = vmatpush.bf16.msra.mxu0 %v720
    %752 = vmatpush.bf16.msra.mxu0 %v719
    %753 = vmatmul.bf16.gmra.mxu0 %v725
    %v754 = vpop.f32.mrf.mxu0
    %v755 = vadd.f32 0.0, %v754
    %v756 = vpop.f32.mrf.mxu0
    %v757 = vadd.f32 0.0, %v756
    %758 = vmatmul.bf16.gmra.mxu0 %v728
    %v759 = vpop.f32.mrf.mxu0
    %v760 = vadd.f32 0.0, %v759
    %v761 = vpop.f32.mrf.mxu0
    %v762 = vadd.f32 0.0, %v761
    %763 = vmatmul.bf16.gmra.mxu0 %v731
    %v764 = vpop.f32.mrf.mxu0
    %v765 = vadd.f32 0.0, %v764
    %v766 = vpop.f32.mrf.mxu0
    %v767 = vadd.f32 0.0, %v766
    %768 = vmatmul.bf16.gmra.mxu0 %v734
    %v769 = vpop.f32.mrf.mxu0
    %v770 = vadd.f32 0.0, %v769
    %v771 = vpop.f32.mrf.mxu0
    %v772 = vadd.f32 0.0, %v771
    %773 = vmatmul.bf16.gmra.mxu0 %v737
    %v774 = vpop.f32.mrf.mxu0
    %v775 = vadd.f32 0.0, %v774
    %v776 = vpop.f32.mrf.mxu0
    %v777 = vadd.f32 0.0, %v776
    %778 = vmatmul.bf16.gmra.mxu0 %v740
    %v779 = vpop.f32.mrf.mxu0
    %v780 = vadd.f32 0.0, %v779
    %v781 = vpop.f32.mrf.mxu0
    %v782 = vadd.f32 0.0, %v781
    %783 = vmatmul.bf16.gmra.mxu0 %v743
    %v784 = vpop.f32.mrf.mxu0
    %v785 = vadd.f32 0.0, %v784
    %v786 = vpop.f32.mrf.mxu0
    %v787 = vadd.f32 0.0, %v786
    %788 = vdwg.mxu0
    %v793 = vunpack.c.l.b16 %v687
    %v794 = vunpack.c.l.b16 %v688
    %v795 = vunpack.c.l.b16 %v689
    %v796 = vunpack.c.l.b16 %v690
    %v797 = vpack.c.b16 %v794, %v793
    %v798 = vpack.c.b16 %v796, %v795
    %v802 = vsel %vm723, %v697, 0
    %v805 = vsel %vm723, %v698, 0
    %v808 = vsel %vm723, %v699, 0
    %v811 = vsel %vm723, %v700, 0
    %v814 = vsel %vm723, %v701, 0
    %v817 = vsel %vm723, %v702, 0
    %v820 = vsel %vm723, %v703, 0
    %822 = vmatpush.bf16.msra.mxu0 0
    %823 = vmatpush.bf16.msra.mxu0 0
    %824 = vmatpush.bf16.msra.mxu0 0
    %825 = vmatpush.bf16.msra.mxu0 0
    %826 = vmatpush.bf16.msra.mxu0 0
    %827 = vmatpush.bf16.msra.mxu0 0
    %828 = vmatpush.bf16.msra.mxu0 %v798
    %829 = vmatpush.bf16.msra.mxu0 %v797
    %830 = vmatmul.bf16.gmra.mxu0 %v802
    %v831 = vpop.f32.mrf.mxu0
    %v832 = vadd.f32 %v755, %v831
    %v833 = vpop.f32.mrf.mxu0
    %v834 = vadd.f32 %v757, %v833
    %835 = vmatmul.bf16.gmra.mxu0 %v805
    %v836 = vpop.f32.mrf.mxu0
    %v837 = vadd.f32 %v760, %v836
    %v838 = vpop.f32.mrf.mxu0
    %v839 = vadd.f32 %v762, %v838
    %840 = vmatmul.bf16.gmra.mxu0 %v808
    %v841 = vpop.f32.mrf.mxu0
    %v842 = vadd.f32 %v765, %v841
    %v843 = vpop.f32.mrf.mxu0
    %v844 = vadd.f32 %v767, %v843
    %845 = vmatmul.bf16.gmra.mxu0 %v811
    %v846 = vpop.f32.mrf.mxu0
    %v847 = vadd.f32 %v770, %v846
    %v848 = vpop.f32.mrf.mxu0
    %v849 = vadd.f32 %v772, %v848
    %850 = vmatmul.bf16.gmra.mxu0 %v814
    %v851 = vpop.f32.mrf.mxu0
    %v852 = vadd.f32 %v775, %v851
    %v853 = vpop.f32.mrf.mxu0
    %v854 = vadd.f32 %v777, %v853
    %855 = vmatmul.bf16.gmra.mxu0 %v817
    %v856 = vpop.f32.mrf.mxu0
    %v857 = vadd.f32 %v780, %v856
    %v858 = vpop.f32.mrf.mxu0
    %v859 = vadd.f32 %v782, %v858
    %860 = vmatmul.bf16.gmra.mxu0 %v820
    %v861 = vpop.f32.mrf.mxu0
    %v862 = vadd.f32 %v785, %v861
    %v863 = vpop.f32.mrf.mxu0
    %v864 = vadd.f32 %v787, %v863
    %865 = vdwg.mxu0
    %v868 = vunpack.c.l.b16 %v695
    %v869 = vunpack.c.l.b16 %v696
    %v870 = vpack.c.b16 %v869, %v868
    %v873 = vsel %vm556, %v326, 0
    %v876 = vsel %vm556, %v327, 0
    %v879 = vsel %vm556, %v328, 0
    %v882 = vsel %vm556, %v329, 0
    %v885 = vsel %vm556, %v330, 0
    %v888 = vsel %vm556, %v331, 0
    %v891 = vsel %vm556, %v332, 0
    %893 = vmatpush.bf16.msra.mxu0 0
    %894 = vmatpush.bf16.msra.mxu0 0
    %895 = vmatpush.bf16.msra.mxu0 0
    %896 = vmatpush.bf16.msra.mxu0 0
    %897 = vmatpush.bf16.msra.mxu0 0
    %898 = vmatpush.bf16.msra.mxu0 0
    %899 = vmatpush.bf16.msra.mxu0 0
    %900 = vmatpush.bf16.msra.mxu0 %v870
    %901 = vmatmul.bf16.gmra.mxu0 %v873
    %v902 = vpop.f32.mrf.mxu0
    %v903 = vadd.f32 0.0, %v902
    %v904 = vpop.f32.mrf.mxu0
    %v905 = vadd.f32 0.0, %v904
    %906 = vmatmul.bf16.gmra.mxu0 %v876
    %v907 = vpop.f32.mrf.mxu0
    %v908 = vadd.f32 0.0, %v907
    %v909 = vpop.f32.mrf.mxu0
    %v910 = vadd.f32 0.0, %v909
    %911 = vmatmul.bf16.gmra.mxu0 %v879
    %v912 = vpop.f32.mrf.mxu0
    %v913 = vadd.f32 0.0, %v912
    %v914 = vpop.f32.mrf.mxu0
    %v915 = vadd.f32 0.0, %v914
    %916 = vmatmul.bf16.gmra.mxu0 %v882
    %v917 = vpop.f32.mrf.mxu0
    %v918 = vadd.f32 0.0, %v917
    %v919 = vpop.f32.mrf.mxu0
    %v920 = vadd.f32 0.0, %v919
    %921 = vmatmul.bf16.gmra.mxu0 %v885
    %v922 = vpop.f32.mrf.mxu0
    %v923 = vadd.f32 0.0, %v922
    %v924 = vpop.f32.mrf.mxu0
    %v925 = vadd.f32 0.0, %v924
    %926 = vmatmul.bf16.gmra.mxu0 %v888
    %v927 = vpop.f32.mrf.mxu0
    %v928 = vadd.f32 0.0, %v927
    %v929 = vpop.f32.mrf.mxu0
    %v930 = vadd.f32 0.0, %v929
    %931 = vmatmul.bf16.gmra.mxu0 %v891
    %v932 = vpop.f32.mrf.mxu0
    %v933 = vadd.f32 0.0, %v932
    %v934 = vpop.f32.mrf.mxu0
    %v935 = vadd.f32 0.0, %v934
    %936 = vdwg.mxu0
    %v937 = vadd.f32 %v832, %v903
    %v938 = vadd.f32 %v834, %v905
    %v939 = vadd.f32 %v837, %v908
    %v940 = vadd.f32 %v839, %v910
    %v941 = vadd.f32 %v842, %v913
    %v942 = vadd.f32 %v844, %v915
    %v943 = vadd.f32 %v847, %v918
    %v944 = vadd.f32 %v849, %v920
    %v945 = vadd.f32 %v852, %v923
    %v946 = vadd.f32 %v854, %v925
    %v947 = vadd.f32 %v857, %v928
    %v948 = vadd.f32 %v859, %v930
    %v949 = vadd.f32 %v862, %v933
    %v950 = vadd.f32 %v864, %v935
    %v951 = vld [vmem:[%s9] sm:$0x1]
    %v953 = vperm.slane %v951, 0
    %v955 = vadd.f32 %v937, %v953
    %v956 = vadd.f32 %v938, %v953
    %v957 = vadd.f32 %v939, %v953
    %v958 = vadd.f32 %v940, %v953
    %v959 = vadd.f32 %v941, %v953
    %v960 = vadd.f32 %v942, %v953
    %v961 = vadd.f32 %v943, %v953
    %v962 = vadd.f32 %v944, %v953
    %v963 = vadd.f32 %v945, %v953
    %v964 = vadd.f32 %v946, %v953
    %v965 = vadd.f32 %v947, %v953
    %v966 = vadd.f32 %v948, %v953
    %v967 = vadd.f32 %v949, %v953
    %v968 = vadd.f32 %v950, %v953
    %v969 = vxor.u32 %v955, 2147483648
    %v970 = vxor.u32 %v956, 2147483648
    %v971 = vxor.u32 %v957, 2147483648
    %v972 = vxor.u32 %v958, 2147483648
    %v973 = vxor.u32 %v959, 2147483648
    %v974 = vxor.u32 %v960, 2147483648
    %v975 = vxor.u32 %v961, 2147483648
    %v976 = vxor.u32 %v962, 2147483648
    %v977 = vxor.u32 %v963, 2147483648
    %v978 = vxor.u32 %v964, 2147483648
    %v979 = vxor.u32 %v965, 2147483648
    %v980 = vxor.u32 %v966, 2147483648
    %v981 = vxor.u32 %v967, 2147483648
    %v982 = vxor.u32 %v968, 2147483648
    %v983 = vmul.f32 %v969, 1.442695
    %v984 = vpow.pop %v983
    %v985 = vmul.f32 %v970, 1.442695
    %v986 = vpow.pop %v985
    %v987 = vmul.f32 %v971, 1.442695
    %v988 = vpow.pop %v987
    %v989 = vmul.f32 %v972, 1.442695
    %v990 = vpow.pop %v989
    %v991 = vmul.f32 %v973, 1.442695
    %v992 = vpow.pop %v991
    %v993 = vmul.f32 %v974, 1.442695
    %v994 = vpow.pop %v993
    %v995 = vmul.f32 %v975, 1.442695
    %v996 = vpow.pop %v995
    %v997 = vmul.f32 %v976, 1.442695
    %v998 = vpow.pop %v997
    %v999 = vmul.f32 %v977, 1.442695
    %v1000 = vpow.pop %v999
    %v1001 = vmul.f32 %v978, 1.442695
    %v1002 = vpow.pop %v1001
    %v1003 = vmul.f32 %v979, 1.442695
    %v1004 = vpow.pop %v1003
    %v1005 = vmul.f32 %v980, 1.442695
    %v1006 = vpow.pop %v1005
    %v1007 = vmul.f32 %v981, 1.442695
    %v1008 = vpow.pop %v1007
    %v1009 = vmul.f32 %v982, 1.442695
    %v1010 = vpow.pop %v1009
    %v1011 = vadd.f32 %v984, 1.0
    %v1012 = vadd.f32 %v986, 1.0
    %v1013 = vadd.f32 %v988, 1.0
    %v1014 = vadd.f32 %v990, 1.0
    %v1015 = vadd.f32 %v992, 1.0
    %v1016 = vadd.f32 %v994, 1.0
    %v1017 = vadd.f32 %v996, 1.0
    %v1018 = vadd.f32 %v998, 1.0
    %v1019 = vadd.f32 %v1000, 1.0
    %v1020 = vadd.f32 %v1002, 1.0
    %v1021 = vadd.f32 %v1004, 1.0
    %v1022 = vadd.f32 %v1006, 1.0
    %v1023 = vadd.f32 %v1008, 1.0
    %v1024 = vadd.f32 %v1010, 1.0
    %v1025 = vrcp.pop %v1011
    %v1026 = vmul.f32 %v1011, %v1025
    %v1027 = vsub.f32 1.0, %v1026
    %v1028 = vmul.f32 %v1025, %v1027
    %v1029 = vadd.f32 %v1025, %v1028
    %vm1030 = vweird.f32 %v1011
    %vm1031 = vweird.f32 %v1025
    %vm1032 = vmor %vm1030, %vm1031
    %v1033 = vsel %vm1032, %v1025, %v1029
    %v1034 = vand.u32 2147483647, %v1011
    %vm1035 = vcmp.eq.f32.partialorder %v1034, 8.507059e+37
    %v1036 = vand.u32 %v1011, 2147483648
    %v1037 = vor.u32 1.1754944e-38, %v1036
    %v1038 = vsel %vm1035, %v1037, %v1033
    %v1039 = vmul.f32 1.0, %v1038
    %v1040 = vrcp.pop %v1012
    %v1041 = vmul.f32 %v1012, %v1040
    %v1042 = vsub.f32 1.0, %v1041
    %v1043 = vmul.f32 %v1040, %v1042
    %v1044 = vadd.f32 %v1040, %v1043
    %vm1045 = vweird.f32 %v1012
    %vm1046 = vweird.f32 %v1040
    %vm1047 = vmor %vm1045, %vm1046
    %v1048 = vsel %vm1047, %v1040, %v1044
    %v1049 = vand.u32 2147483647, %v1012
    %vm1050 = vcmp.eq.f32.partialorder %v1049, 8.507059e+37
    %v1051 = vand.u32 %v1012, 2147483648
    %v1052 = vor.u32 1.1754944e-38, %v1051
    %v1053 = vsel %vm1050, %v1052, %v1048
    %v1054 = vmul.f32 1.0, %v1053
    %v1055 = vrcp.pop %v1013
    %v1056 = vmul.f32 %v1013, %v1055
    %v1057 = vsub.f32 1.0, %v1056
    %v1058 = vmul.f32 %v1055, %v1057
    %v1059 = vadd.f32 %v1055, %v1058
    %vm1060 = vweird.f32 %v1013
    %vm1061 = vweird.f32 %v1055
    %vm1062 = vmor %vm1060, %vm1061
    %v1063 = vsel %vm1062, %v1055, %v1059
    %v1064 = vand.u32 2147483647, %v1013
    %vm1065 = vcmp.eq.f32.partialorder %v1064, 8.507059e+37
    %v1066 = vand.u32 %v1013, 2147483648
    %v1067 = vor.u32 1.1754944e-38, %v1066
    %v1068 = vsel %vm1065, %v1067, %v1063
    %v1069 = vmul.f32 1.0, %v1068
    %v1070 = vrcp.pop %v1014
    %v1071 = vmul.f32 %v1014, %v1070
    %v1072 = vsub.f32 1.0, %v1071
    %v1073 = vmul.f32 %v1070, %v1072
    %v1074 = vadd.f32 %v1070, %v1073
    %vm1075 = vweird.f32 %v1014
    %vm1076 = vweird.f32 %v1070
    %vm1077 = vmor %vm1075, %vm1076
    %v1078 = vsel %vm1077, %v1070, %v1074
    %v1079 = vand.u32 2147483647, %v1014
    %vm1080 = vcmp.eq.f32.partialorder %v1079, 8.507059e+37
    %v1081 = vand.u32 %v1014, 2147483648
    %v1082 = vor.u32 1.1754944e-38, %v1081
    %v1083 = vsel %vm1080, %v1082, %v1078
    %v1084 = vmul.f32 1.0, %v1083
    %v1085 = vrcp.pop %v1015
    %v1086 = vmul.f32 %v1015, %v1085
    %v1087 = vsub.f32 1.0, %v1086
    %v1088 = vmul.f32 %v1085, %v1087
    %v1089 = vadd.f32 %v1085, %v1088
    %vm1090 = vweird.f32 %v1015
    %vm1091 = vweird.f32 %v1085
    %vm1092 = vmor %vm1090, %vm1091
    %v1093 = vsel %vm1092, %v1085, %v1089
    %v1094 = vand.u32 2147483647, %v1015
    %vm1095 = vcmp.eq.f32.partialorder %v1094, 8.507059e+37
    %v1096 = vand.u32 %v1015, 2147483648
    %v1097 = vor.u32 1.1754944e-38, %v1096
    %v1098 = vsel %vm1095, %v1097, %v1093
    %v1099 = vmul.f32 1.0, %v1098
    %v1100 = vrcp.pop %v1016
    %v1101 = vmul.f32 %v1016, %v1100
    %v1102 = vsub.f32 1.0, %v1101
    %v1103 = vmul.f32 %v1100, %v1102
    %v1104 = vadd.f32 %v1100, %v1103
    %vm1105 = vweird.f32 %v1016
    %vm1106 = vweird.f32 %v1100
    %vm1107 = vmor %vm1105, %vm1106
    %v1108 = vsel %vm1107, %v1100, %v1104
    %v1109 = vand.u32 2147483647, %v1016
    %vm1110 = vcmp.eq.f32.partialorder %v1109, 8.507059e+37
    %v1111 = vand.u32 %v1016, 2147483648
    %v1112 = vor.u32 1.1754944e-38, %v1111
    %v1113 = vsel %vm1110, %v1112, %v1108
    %v1114 = vmul.f32 1.0, %v1113
    %v1115 = vrcp.pop %v1017
    %v1116 = vmul.f32 %v1017, %v1115
    %v1117 = vsub.f32 1.0, %v1116
    %v1118 = vmul.f32 %v1115, %v1117
    %v1119 = vadd.f32 %v1115, %v1118
    %vm1120 = vweird.f32 %v1017
    %vm1121 = vweird.f32 %v1115
    %vm1122 = vmor %vm1120, %vm1121
    %v1123 = vsel %vm1122, %v1115, %v1119
    %v1124 = vand.u32 2147483647, %v1017
    %vm1125 = vcmp.eq.f32.partialorder %v1124, 8.507059e+37
    %v1126 = vand.u32 %v1017, 2147483648
    %v1127 = vor.u32 1.1754944e-38, %v1126
    %v1128 = vsel %vm1125, %v1127, %v1123
    %v1129 = vmul.f32 1.0, %v1128
    %v1130 = vrcp.pop %v1018
    %v1131 = vmul.f32 %v1018, %v1130
    %v1132 = vsub.f32 1.0, %v1131
    %v1133 = vmul.f32 %v1130, %v1132
    %v1134 = vadd.f32 %v1130, %v1133
    %vm1135 = vweird.f32 %v1018
    %vm1136 = vweird.f32 %v1130
    %vm1137 = vmor %vm1135, %vm1136
    %v1138 = vsel %vm1137, %v1130, %v1134
    %v1139 = vand.u32 2147483647, %v1018
    %vm1140 = vcmp.eq.f32.partialorder %v1139, 8.507059e+37
    %v1141 = vand.u32 %v1018, 2147483648
    %v1142 = vor.u32 1.1754944e-38, %v1141
    %v1143 = vsel %vm1140, %v1142, %v1138
    %v1144 = vmul.f32 1.0, %v1143
    %v1145 = vrcp.pop %v1019
    %v1146 = vmul.f32 %v1019, %v1145
    %v1147 = vsub.f32 1.0, %v1146
    %v1148 = vmul.f32 %v1145, %v1147
    %v1149 = vadd.f32 %v1145, %v1148
    %vm1150 = vweird.f32 %v1019
    %vm1151 = vweird.f32 %v1145
    %vm1152 = vmor %vm1150, %vm1151
    %v1153 = vsel %vm1152, %v1145, %v1149
    %v1154 = vand.u32 2147483647, %v1019
    %vm1155 = vcmp.eq.f32.partialorder %v1154, 8.507059e+37
    %v1156 = vand.u32 %v1019, 2147483648
    %v1157 = vor.u32 1.1754944e-38, %v1156
    %v1158 = vsel %vm1155, %v1157, %v1153
    %v1159 = vmul.f32 1.0, %v1158
    %v1160 = vrcp.pop %v1020
    %v1161 = vmul.f32 %v1020, %v1160
    %v1162 = vsub.f32 1.0, %v1161
    %v1163 = vmul.f32 %v1160, %v1162
    %v1164 = vadd.f32 %v1160, %v1163
    %vm1165 = vweird.f32 %v1020
    %vm1166 = vweird.f32 %v1160
    %vm1167 = vmor %vm1165, %vm1166
    %v1168 = vsel %vm1167, %v1160, %v1164
    %v1169 = vand.u32 2147483647, %v1020
    %vm1170 = vcmp.eq.f32.partialorder %v1169, 8.507059e+37
    %v1171 = vand.u32 %v1020, 2147483648
    %v1172 = vor.u32 1.1754944e-38, %v1171
    %v1173 = vsel %vm1170, %v1172, %v1168
    %v1174 = vmul.f32 1.0, %v1173
    %v1175 = vrcp.pop %v1021
    %v1176 = vmul.f32 %v1021, %v1175
    %v1177 = vsub.f32 1.0, %v1176
    %v1178 = vmul.f32 %v1175, %v1177
    %v1179 = vadd.f32 %v1175, %v1178
    %vm1180 = vweird.f32 %v1021
    %vm1181 = vweird.f32 %v1175
    %vm1182 = vmor %vm1180, %vm1181
    %v1183 = vsel %vm1182, %v1175, %v1179
    %v1184 = vand.u32 2147483647, %v1021
    %vm1185 = vcmp.eq.f32.partialorder %v1184, 8.507059e+37
    %v1186 = vand.u32 %v1021, 2147483648
    %v1187 = vor.u32 1.1754944e-38, %v1186
    %v1188 = vsel %vm1185, %v1187, %v1183
    %v1189 = vmul.f32 1.0, %v1188
    %v1190 = vrcp.pop %v1022
    %v1191 = vmul.f32 %v1022, %v1190
    %v1192 = vsub.f32 1.0, %v1191
    %v1193 = vmul.f32 %v1190, %v1192
    %v1194 = vadd.f32 %v1190, %v1193
    %vm1195 = vweird.f32 %v1022
    %vm1196 = vweird.f32 %v1190
    %vm1197 = vmor %vm1195, %vm1196
    %v1198 = vsel %vm1197, %v1190, %v1194
    %v1199 = vand.u32 2147483647, %v1022
    %vm1200 = vcmp.eq.f32.partialorder %v1199, 8.507059e+37
    %v1201 = vand.u32 %v1022, 2147483648
    %v1202 = vor.u32 1.1754944e-38, %v1201
    %v1203 = vsel %vm1200, %v1202, %v1198
    %v1204 = vmul.f32 1.0, %v1203
    %v1205 = vrcp.pop %v1023
    %v1206 = vmul.f32 %v1023, %v1205
    %v1207 = vsub.f32 1.0, %v1206
    %v1208 = vmul.f32 %v1205, %v1207
    %v1209 = vadd.f32 %v1205, %v1208
    %vm1210 = vweird.f32 %v1023
    %vm1211 = vweird.f32 %v1205
    %vm1212 = vmor %vm1210, %vm1211
    %v1213 = vsel %vm1212, %v1205, %v1209
    %v1214 = vand.u32 2147483647, %v1023
    %vm1215 = vcmp.eq.f32.partialorder %v1214, 8.507059e+37
    %v1216 = vand.u32 %v1023, 2147483648
    %v1217 = vor.u32 1.1754944e-38, %v1216
    %v1218 = vsel %vm1215, %v1217, %v1213
    %v1219 = vmul.f32 1.0, %v1218
    %v1220 = vrcp.pop %v1024
    %v1221 = vmul.f32 %v1024, %v1220
    %v1222 = vsub.f32 1.0, %v1221
    %v1223 = vmul.f32 %v1220, %v1222
    %v1224 = vadd.f32 %v1220, %v1223
    %vm1225 = vweird.f32 %v1024
    %vm1226 = vweird.f32 %v1220
    %vm1227 = vmor %vm1225, %vm1226
    %v1228 = vsel %vm1227, %v1220, %v1224
    %v1229 = vand.u32 2147483647, %v1024
    %vm1230 = vcmp.eq.f32.partialorder %v1229, 8.507059e+37
    %v1231 = vand.u32 %v1024, 2147483648
    %v1232 = vor.u32 1.1754944e-38, %v1231
    %v1233 = vsel %vm1230, %v1232, %v1228
    %v1234 = vmul.f32 1.0, %v1233
    %vm1235 = vcmp.gt.f32.partialorder %v955, 20.0
    %vm1236 = vcmp.gt.f32.partialorder %v956, 20.0
    %vm1237 = vcmp.gt.f32.partialorder %v957, 20.0
    %vm1238 = vcmp.gt.f32.partialorder %v958, 20.0
    %vm1239 = vcmp.gt.f32.partialorder %v959, 20.0
    %vm1240 = vcmp.gt.f32.partialorder %v960, 20.0
    %vm1241 = vcmp.gt.f32.partialorder %v961, 20.0
    %vm1242 = vcmp.gt.f32.partialorder %v962, 20.0
    %vm1243 = vcmp.gt.f32.partialorder %v963, 20.0
    %vm1244 = vcmp.gt.f32.partialorder %v964, 20.0
    %vm1245 = vcmp.gt.f32.partialorder %v965, 20.0
    %vm1246 = vcmp.gt.f32.partialorder %v966, 20.0
    %vm1247 = vcmp.gt.f32.partialorder %v967, 20.0
    %vm1248 = vcmp.gt.f32.partialorder %v968, 20.0
    %v1249 = vmin.f32 %v955, 20.0
    %v1250 = vmin.f32 %v956, 20.0
    %v1251 = vmin.f32 %v957, 20.0
    %v1252 = vmin.f32 %v958, 20.0
    %v1253 = vmin.f32 %v959, 20.0
    %v1254 = vmin.f32 %v960, 20.0
    %v1255 = vmin.f32 %v961, 20.0
    %v1256 = vmin.f32 %v962, 20.0
    %v1257 = vmin.f32 %v963, 20.0
    %v1258 = vmin.f32 %v964, 20.0
    %v1259 = vmin.f32 %v965, 20.0
    %v1260 = vmin.f32 %v966, 20.0
    %v1261 = vmin.f32 %v967, 20.0
    %v1262 = vmin.f32 %v968, 20.0
    %v1263 = vmul.f32 %v1249, 1.442695
    %v1264 = vpow.pop %v1263
    %v1265 = vmul.f32 %v1250, 1.442695
    %v1266 = vpow.pop %v1265
    %v1267 = vmul.f32 %v1251, 1.442695
    %v1268 = vpow.pop %v1267
    %v1269 = vmul.f32 %v1252, 1.442695
    %v1270 = vpow.pop %v1269
    %v1271 = vmul.f32 %v1253, 1.442695
    %v1272 = vpow.pop %v1271
    %v1273 = vmul.f32 %v1254, 1.442695
    %v1274 = vpow.pop %v1273
    %v1275 = vmul.f32 %v1255, 1.442695
    %v1276 = vpow.pop %v1275
    %v1277 = vmul.f32 %v1256, 1.442695
    %v1278 = vpow.pop %v1277
    %v1279 = vmul.f32 %v1257, 1.442695
    %v1280 = vpow.pop %v1279
    %v1281 = vmul.f32 %v1258, 1.442695
    %v1282 = vpow.pop %v1281
    %v1283 = vmul.f32 %v1259, 1.442695
    %v1284 = vpow.pop %v1283
    %v1285 = vmul.f32 %v1260, 1.442695
    %v1286 = vpow.pop %v1285
    %v1287 = vmul.f32 %v1261, 1.442695
    %v1288 = vpow.pop %v1287
    %v1289 = vmul.f32 %v1262, 1.442695
    %v1290 = vpow.pop %v1289
    %v1291 = vadd.f32 %v1264, 1.0
    %v1292 = vlog2.pop %v1291
    %v1293 = vmul.f32 %v1292, 0.6931472
    %v1294 = vmul.f32 -0.5, %v1264
    %v1295 = vadd.f32 %v1294, 1.0
    %v1296 = vmul.f32 %v1295, %v1264
    %v1297 = vand.u32 2147483647, %v1264
    %vm1298 = vcmp.lt.f32.partialorder %v1297, 0.0004427343
    %v1299 = vsel %vm1298, %v1296, %v1293
    %v1300 = vadd.f32 %v1266, 1.0
    %v1301 = vlog2.pop %v1300
    %v1302 = vmul.f32 %v1301, 0.6931472
    %v1303 = vmul.f32 -0.5, %v1266
    %v1304 = vadd.f32 %v1303, 1.0
    %v1305 = vmul.f32 %v1304, %v1266
    %v1306 = vand.u32 2147483647, %v1266
    %vm1307 = vcmp.lt.f32.partialorder %v1306, 0.0004427343
    %v1308 = vsel %vm1307, %v1305, %v1302
    %v1309 = vadd.f32 %v1268, 1.0
    %v1310 = vlog2.pop %v1309
    %v1311 = vmul.f32 %v1310, 0.6931472
    %v1312 = vmul.f32 -0.5, %v1268
    %v1313 = vadd.f32 %v1312, 1.0
    %v1314 = vmul.f32 %v1313, %v1268
    %v1315 = vand.u32 2147483647, %v1268
    %vm1316 = vcmp.lt.f32.partialorder %v1315, 0.0004427343
    %v1317 = vsel %vm1316, %v1314, %v1311
    %v1318 = vadd.f32 %v1270, 1.0
    %v1319 = vlog2.pop %v1318
    %v1320 = vmul.f32 %v1319, 0.6931472
    %v1321 = vmul.f32 -0.5, %v1270
    %v1322 = vadd.f32 %v1321, 1.0
    %v1323 = vmul.f32 %v1322, %v1270
    %v1324 = vand.u32 2147483647, %v1270
    %vm1325 = vcmp.lt.f32.partialorder %v1324, 0.0004427343
    %v1326 = vsel %vm1325, %v1323, %v1320
    %v1327 = vadd.f32 %v1272, 1.0
    %v1328 = vlog2.pop %v1327
    %v1329 = vmul.f32 %v1328, 0.6931472
    %v1330 = vmul.f32 -0.5, %v1272
    %v1331 = vadd.f32 %v1330, 1.0
    %v1332 = vmul.f32 %v1331, %v1272
    %v1333 = vand.u32 2147483647, %v1272
    %vm1334 = vcmp.lt.f32.partialorder %v1333, 0.0004427343
    %v1335 = vsel %vm1334, %v1332, %v1329
    %v1336 = vadd.f32 %v1274, 1.0
    %v1337 = vlog2.pop %v1336
    %v1338 = vmul.f32 %v1337, 0.6931472
    %v1339 = vmul.f32 -0.5, %v1274
    %v1340 = vadd.f32 %v1339, 1.0
    %v1341 = vmul.f32 %v1340, %v1274
    %v1342 = vand.u32 2147483647, %v1274
    %vm1343 = vcmp.lt.f32.partialorder %v1342, 0.0004427343
    %v1344 = vsel %vm1343, %v1341, %v1338
    %v1345 = vadd.f32 %v1276, 1.0
    %v1346 = vlog2.pop %v1345
    %v1347 = vmul.f32 %v1346, 0.6931472
    %v1348 = vmul.f32 -0.5, %v1276
    %v1349 = vadd.f32 %v1348, 1.0
    %v1350 = vmul.f32 %v1349, %v1276
    %v1351 = vand.u32 2147483647, %v1276
    %vm1352 = vcmp.lt.f32.partialorder %v1351, 0.0004427343
    %v1353 = vsel %vm1352, %v1350, %v1347
    %v1354 = vadd.f32 %v1278, 1.0
    %v1355 = vlog2.pop %v1354
    %v1356 = vmul.f32 %v1355, 0.6931472
    %v1357 = vmul.f32 -0.5, %v1278
    %v1358 = vadd.f32 %v1357, 1.0
    %v1359 = vmul.f32 %v1358, %v1278
    %v1360 = vand.u32 2147483647, %v1278
    %vm1361 = vcmp.lt.f32.partialorder %v1360, 0.0004427343
    %v1362 = vsel %vm1361, %v1359, %v1356
    %v1363 = vadd.f32 %v1280, 1.0
    %v1364 = vlog2.pop %v1363
    %v1365 = vmul.f32 %v1364, 0.6931472
    %v1366 = vmul.f32 -0.5, %v1280
    %v1367 = vadd.f32 %v1366, 1.0
    %v1368 = vmul.f32 %v1367, %v1280
    %v1369 = vand.u32 2147483647, %v1280
    %vm1370 = vcmp.lt.f32.partialorder %v1369, 0.0004427343
    %v1371 = vsel %vm1370, %v1368, %v1365
    %v1372 = vadd.f32 %v1282, 1.0
    %v1373 = vlog2.pop %v1372
    %v1374 = vmul.f32 %v1373, 0.6931472
    %v1375 = vmul.f32 -0.5, %v1282
    %v1376 = vadd.f32 %v1375, 1.0
    %v1377 = vmul.f32 %v1376, %v1282
    %v1378 = vand.u32 2147483647, %v1282
    %vm1379 = vcmp.lt.f32.partialorder %v1378, 0.0004427343
    %v1380 = vsel %vm1379, %v1377, %v1374
    %v1381 = vadd.f32 %v1284, 1.0
    %v1382 = vlog2.pop %v1381
    %v1383 = vmul.f32 %v1382, 0.6931472
    %v1384 = vmul.f32 -0.5, %v1284
    %v1385 = vadd.f32 %v1384, 1.0
    %v1386 = vmul.f32 %v1385, %v1284
    %v1387 = vand.u32 2147483647, %v1284
    %vm1388 = vcmp.lt.f32.partialorder %v1387, 0.0004427343
    %v1389 = vsel %vm1388, %v1386, %v1383
    %v1390 = vadd.f32 %v1286, 1.0
    %v1391 = vlog2.pop %v1390
    %v1392 = vmul.f32 %v1391, 0.6931472
    %v1393 = vmul.f32 -0.5, %v1286
    %v1394 = vadd.f32 %v1393, 1.0
    %v1395 = vmul.f32 %v1394, %v1286
    %v1396 = vand.u32 2147483647, %v1286
    %vm1397 = vcmp.lt.f32.partialorder %v1396, 0.0004427343
    %v1398 = vsel %vm1397, %v1395, %v1392
    %v1399 = vadd.f32 %v1288, 1.0
    %v1400 = vlog2.pop %v1399
    %v1401 = vmul.f32 %v1400, 0.6931472
    %v1402 = vmul.f32 -0.5, %v1288
    %v1403 = vadd.f32 %v1402, 1.0
    %v1404 = vmul.f32 %v1403, %v1288
    %v1405 = vand.u32 2147483647, %v1288
    %vm1406 = vcmp.lt.f32.partialorder %v1405, 0.0004427343
    %v1407 = vsel %vm1406, %v1404, %v1401
    %v1408 = vadd.f32 %v1290, 1.0
    %v1409 = vlog2.pop %v1408
    %v1410 = vmul.f32 %v1409, 0.6931472
    %v1411 = vmul.f32 -0.5, %v1290
    %v1412 = vadd.f32 %v1411, 1.0
    %v1413 = vmul.f32 %v1412, %v1290
    %v1414 = vand.u32 2147483647, %v1290
    %vm1415 = vcmp.lt.f32.partialorder %v1414, 0.0004427343
    %v1416 = vsel %vm1415, %v1413, %v1410
    %v1417 = vsel %vm1235, %v955, %v1299
    %v1418 = vsel %vm1236, %v956, %v1308
    %v1419 = vsel %vm1237, %v957, %v1317
    %v1420 = vsel %vm1238, %v958, %v1326
    %v1421 = vsel %vm1239, %v959, %v1335
    %v1422 = vsel %vm1240, %v960, %v1344
    %v1423 = vsel %vm1241, %v961, %v1353
    %v1424 = vsel %vm1242, %v962, %v1362
    %v1425 = vsel %vm1243, %v963, %v1371
    %v1426 = vsel %vm1244, %v964, %v1380
    %v1427 = vsel %vm1245, %v965, %v1389
    %v1428 = vsel %vm1246, %v966, %v1398
    %v1429 = vsel %vm1247, %v967, %v1407
    %v1430 = vsel %vm1248, %v968, %v1416
    %1445 = vrot.lane.b32.xlu0 %v1417, 96
    %v1446 = vpop.permute.xlu0 %1445
    %1447 = vrot.lane.b32.xlu0 %v1418, 96
    %v1448 = vpop.permute.xlu0 %1447
    %1449 = vrot.lane.b32.xlu0 %v1419, 96
    %v1450 = vpop.permute.xlu0 %1449
    %1451 = vrot.lane.b32.xlu0 %v1420, 96
    %v1452 = vpop.permute.xlu0 %1451
    %1453 = vrot.lane.b32.xlu0 %v1421, 96
    %v1454 = vpop.permute.xlu0 %1453
    %1455 = vrot.lane.b32.xlu0 %v1422, 96
    %v1456 = vpop.permute.xlu0 %1455
    %1457 = vrot.lane.b32.xlu0 %v1423, 96
    %v1458 = vpop.permute.xlu0 %1457
    %1459 = vrot.lane.b32.xlu0 %v1424, 96
    %v1460 = vpop.permute.xlu0 %1459
    %1461 = vrot.lane.b32.xlu0 %v1425, 96
    %v1462 = vpop.permute.xlu0 %1461
    %1463 = vrot.lane.b32.xlu0 %v1426, 96
    %v1464 = vpop.permute.xlu0 %1463
    %1465 = vrot.lane.b32.xlu0 %v1427, 96
    %v1466 = vpop.permute.xlu0 %1465
    %1467 = vrot.lane.b32.xlu0 %v1428, 96
    %v1468 = vpop.permute.xlu0 %1467
    %1469 = vrot.lane.b32.xlu0 %v1429, 96
    %v1470 = vpop.permute.xlu0 %1469
    %1471 = vrot.lane.b32.xlu0 %v1430, 96
    %v1472 = vpop.permute.xlu0 %1471
    %v1487 = vmul.f32 %v1039, %v1446
    %v1488 = vmul.f32 %v1054, %v1448
    %v1489 = vmul.f32 %v1069, %v1450
    %v1490 = vmul.f32 %v1084, %v1452
    %v1491 = vmul.f32 %v1099, %v1454
    %v1492 = vmul.f32 %v1114, %v1456
    %v1493 = vmul.f32 %v1129, %v1458
    %v1494 = vmul.f32 %v1144, %v1460
    %v1495 = vmul.f32 %v1159, %v1462
    %v1496 = vmul.f32 %v1174, %v1464
    %v1497 = vmul.f32 %v1189, %v1466
    %v1498 = vmul.f32 %v1204, %v1468
    %v1499 = vmul.f32 %v1219, %v1470
    %v1500 = vmul.f32 %v1234, %v1472
    %v1501 = vpack.c.bf16 %v1488, %v1487
    %v1502 = vpack.c.bf16 %v1490, %v1489
    %v1503 = vpack.c.bf16 %v1492, %v1491
    %v1504 = vpack.c.bf16 %v1494, %v1493
    %v1505 = vpack.c.bf16 %v1496, %v1495
    %v1506 = vpack.c.bf16 %v1498, %v1497
    %v1507 = vpack.c.bf16 %v1500, %v1499
    %vm1508 = vcmask 916480
    %v1510 = vsel %vm1508, %v554, 0
    %1512 = vmatpush.bf16.msra.mxu0 0
    %1513 = vmatpush.bf16.msra.mxu0 %v1507
    %1514 = vmatpush.bf16.msra.mxu0 %v1506
    %1515 = vmatpush.bf16.msra.mxu0 %v1505
    %1516 = vmatpush.bf16.msra.mxu0 %v1504
    %1517 = vmatpush.bf16.msra.mxu0 %v1503
    %1518 = vmatpush.bf16.msra.mxu0 %v1502
    %1519 = vmatpush.bf16.msra.mxu0 %v1501
    %1520 = vmatmul.bf16.gmra.mxu0 %v1510
    %v1521 = vpop.f32.mrf.mxu0
    %v1522 = vadd.f32 0.0, %v1521
    %v1523 = vpop.f32.mrf.mxu0
    %v1524 = vadd.f32 0.0, %v1523
    %1525 = vdwg.mxu0
    %v1526 = vld [vmem:[%s12] sm:$0x1]
    %v1528 = vperm.slane %v1526, 0
    %v1530 = vsub.f32 %v1522, %v1528
    %v1531 = vsub.f32 %v1524, %v1528
    %v1532 = vld [vmem:[%s13] sm:$0x1]
    %v1533 = vadd.f32 %v1532, 1e-05
    %v1534 = vrsqrt.pop %v1533
    %v1535 = vmul.f32 %v1534, %v1533
    %v1536 = vmul.f32 %v1535, %v1534
    %v1537 = vmul.f32 0.5, %v1536
    %v1538 = vsub.f32 1.5, %v1537
    %v1539 = vmul.f32 %v1534, %v1538
    %vm1540 = vweird.f32 %v1533
    %vm1541 = vweird.f32 %v1534
    %vm1542 = vmor %vm1540, %vm1541
    %v1543 = vsel %vm1542, %v1534, %v1539
    %v1545 = vperm.slane %v1543, 0
    %v1547 = vmul.f32 %v1530, %v1545
    %v1548 = vmul.f32 %v1531, %v1545
    %v1549 = vld [vmem:[%s10] sm:$0x1]
    %v1551 = vperm.slane %v1549, 0
    %v1553 = vmul.f32 %v1547, %v1551
    %v1554 = vmul.f32 %v1548, %v1551
    %v1555 = vld [vmem:[%s11] sm:$0x1]
    %v1557 = vperm.slane %v1555, 0
    %v1559 = vadd.f32 %v1553, %v1557
    %v1560 = vadd.f32 %v1554, %v1557
    %v1561 = vadd.f32 %v1559, %v150
    %v1562 = vadd.f32 %v1560, %v152
    %v1563 = vpack.c.bf16 %v1562, %v1561
    %1564 = vmatpush.bf16.msra.mxu0 0
    %1565 = vmatpush.bf16.msra.mxu0 0
    %1566 = vmatpush.bf16.msra.mxu0 0
    %1567 = vmatpush.bf16.msra.mxu0 0
    %1568 = vmatpush.bf16.msra.mxu0 0
    %1569 = vmatpush.bf16.msra.mxu0 0
    %1570 = vmatpush.bf16.msra.mxu0 0
    %1571 = vmatpush.bf16.msra.mxu0 %v1563
    %1572 = vmatmul.bf16.gmra.mxu0 %v558
    %v1573 = vpop.f32.mrf.mxu0
    %v1574 = vadd.f32 0.0, %v1573
    %v1575 = vpop.f32.mrf.mxu0
    %v1576 = vadd.f32 0.0, %v1575
    %1577 = vmatmul.bf16.gmra.mxu0 %v561
    %v1578 = vpop.f32.mrf.mxu0
    %v1579 = vadd.f32 0.0, %v1578
    %v1580 = vpop.f32.mrf.mxu0
    %v1581 = vadd.f32 0.0, %v1580
    %1582 = vmatmul.bf16.gmra.mxu0 %v564
    %v1583 = vpop.f32.mrf.mxu0
    %v1584 = vadd.f32 0.0, %v1583
    %v1585 = vpop.f32.mrf.mxu0
    %v1586 = vadd.f32 0.0, %v1585
    %1587 = vmatmul.bf16.gmra.mxu0 %v567
    %v1588 = vpop.f32.mrf.mxu0
    %v1589 = vadd.f32 0.0, %v1588
    %v1590 = vpop.f32.mrf.mxu0
    %v1591 = vadd.f32 0.0, %v1590
    %1592 = vmatmul.bf16.gmra.mxu0 %v570
    %v1593 = vpop.f32.mrf.mxu0
    %v1594 = vadd.f32 0.0, %v1593
    %v1595 = vpop.f32.mrf.mxu0
    %v1596 = vadd.f32 0.0, %v1595
    %1597 = vmatmul.bf16.gmra.mxu0 %v573
    %v1598 = vpop.f32.mrf.mxu0
    %v1599 = vadd.f32 0.0, %v1598
    %v1600 = vpop.f32.mrf.mxu0
    %v1601 = vadd.f32 0.0, %v1600
    %1602 = vmatmul.bf16.gmra.mxu0 %v576
    %v1603 = vpop.f32.mrf.mxu0
    %v1604 = vadd.f32 0.0, %v1603
    %v1605 = vpop.f32.mrf.mxu0
    %v1606 = vadd.f32 0.0, %v1605
    %1607 = vdwg.mxu0
    %1608 = vmatpush.bf16.msra.mxu0 0
    %1609 = vmatpush.bf16.msra.mxu0 0
    %1610 = vmatpush.bf16.msra.mxu0 0
    %1611 = vmatpush.bf16.msra.mxu0 0
    %1612 = vmatpush.bf16.msra.mxu0 0
    %1613 = vmatpush.bf16.msra.mxu0 0
    %1614 = vmatpush.bf16.msra.mxu0 0
    %1615 = vmatpush.bf16.msra.mxu0 %v1563
    %1616 = vmatmul.bf16.gmra.mxu0 %v623
    %v1617 = vpop.f32.mrf.mxu0
    %v1618 = vadd.f32 0.0, %v1617
    %v1619 = vpop.f32.mrf.mxu0
    %v1620 = vadd.f32 0.0, %v1619
    %1621 = vmatmul.bf16.gmra.mxu0 %v626
    %v1622 = vpop.f32.mrf.mxu0
    %v1623 = vadd.f32 0.0, %v1622
    %v1624 = vpop.f32.mrf.mxu0
    %v1625 = vadd.f32 0.0, %v1624
    %1626 = vmatmul.bf16.gmra.mxu0 %v629
    %v1627 = vpop.f32.mrf.mxu0
    %v1628 = vadd.f32 0.0, %v1627
    %v1629 = vpop.f32.mrf.mxu0
    %v1630 = vadd.f32 0.0, %v1629
    %1631 = vmatmul.bf16.gmra.mxu0 %v632
    %v1632 = vpop.f32.mrf.mxu0
    %v1633 = vadd.f32 0.0, %v1632
    %v1634 = vpop.f32.mrf.mxu0
    %v1635 = vadd.f32 0.0, %v1634
    %1636 = vmatmul.bf16.gmra.mxu0 %v635
    %v1637 = vpop.f32.mrf.mxu0
    %v1638 = vadd.f32 0.0, %v1637
    %v1639 = vpop.f32.mrf.mxu0
    %v1640 = vadd.f32 0.0, %v1639
    %1641 = vmatmul.bf16.gmra.mxu0 %v638
    %v1642 = vpop.f32.mrf.mxu0
    %v1643 = vadd.f32 0.0, %v1642
    %v1644 = vpop.f32.mrf.mxu0
    %v1645 = vadd.f32 0.0, %v1644
    %1646 = vmatmul.bf16.gmra.mxu0 %v641
    %v1647 = vpop.f32.mrf.mxu0
    %v1648 = vadd.f32 0.0, %v1647
    %v1649 = vpop.f32.mrf.mxu0
    %v1650 = vadd.f32 0.0, %v1649
    %1651 = vdwg.mxu0
    %s1652 = scalar_lea.vmem %s8, 40
    %v1653 = vld [vmem:[%s1652] sm:$0xf]
    %v1654 = vld [vmem:[%s1652 + $0x4] sm:$0xf]
    %v1655 = vld [vmem:[%s1652 + $0x8] sm:$0xf]
    %v1656 = vld [vmem:[%s1652 + $0xc] sm:$0xf]
    %v1657 = vld [vmem:[%s1652 + $0x10] sm:$0xf]
    %v1658 = vld [vmem:[%s1652 + $0x14] sm:$0xf]
    %v1659 = vld [vmem:[%s1652 + $0x18] sm:$0xf]
    %v1660 = vld [vmem:[%s1652 + $0x1c] sm:$0xf]
    %v1661 = vld [vmem:[%s1652 + $0x20] sm:$0xf]
    %v1662 = vld [vmem:[%s1652 + $0x24] sm:$0xf]
    %v1663 = vpack.c.bf16 %v1576, %v1574
    %v1664 = vpack.c.bf16 %v1581, %v1579
    %v1665 = vpack.c.bf16 %v1586, %v1584
    %v1666 = vpack.c.bf16 %v1591, %v1589
    %v1667 = vpack.c.bf16 %v1596, %v1594
    %v1668 = vpack.c.bf16 %v1601, %v1599
    %v1669 = vpack.c.bf16 %v1606, %v1604
    %v1670 = vpack.c.bf16 %v1620, %v1618
    %v1671 = vpack.c.bf16 %v1625, %v1623
    %v1672 = vpack.c.bf16 %v1630, %v1628
    %v1673 = vpack.c.bf16 %v1635, %v1633
    %v1674 = vpack.c.bf16 %v1640, %v1638
    %v1675 = vpack.c.bf16 %v1645, %v1643
    %v1676 = vpack.c.bf16 %v1650, %v1648
    %v1681 = vunpack.c.l.b16 %v1657
    %v1682 = vunpack.c.l.b16 %v1658
    %v1683 = vunpack.c.l.b16 %v1659
    %v1684 = vunpack.c.l.b16 %v1660
    %v1685 = vpack.c.b16 %v1682, %v1681
    %v1686 = vpack.c.b16 %v1684, %v1683
    %v1690 = vsel %vm723, %v1670, 0
    %v1693 = vsel %vm723, %v1671, 0
    %v1696 = vsel %vm723, %v1672, 0
    %v1699 = vsel %vm723, %v1673, 0
    %v1702 = vsel %vm723, %v1674, 0
    %v1705 = vsel %vm723, %v1675, 0
    %v1708 = vsel %vm723, %v1676, 0
    %1710 = vmatpush.bf16.msra.mxu0 0
    %1711 = vmatpush.bf16.msra.mxu0 0
    %1712 = vmatpush.bf16.msra.mxu0 0
    %1713 = vmatpush.bf16.msra.mxu0 0
    %1714 = vmatpush.bf16.msra.mxu0 0
    %1715 = vmatpush.bf16.msra.mxu0 0
    %1716 = vmatpush.bf16.msra.mxu0 %v1686
    %1717 = vmatpush.bf16.msra.mxu0 %v1685
    %1718 = vmatmul.bf16.gmra.mxu0 %v1690
    %v1719 = vpop.f32.mrf.mxu0
    %v1720 = vadd.f32 0.0, %v1719
    %v1721 = vpop.f32.mrf.mxu0
    %v1722 = vadd.f32 0.0, %v1721
    %1723 = vmatmul.bf16.gmra.mxu0 %v1693
    %v1724 = vpop.f32.mrf.mxu0
    %v1725 = vadd.f32 0.0, %v1724
    %v1726 = vpop.f32.mrf.mxu0
    %v1727 = vadd.f32 0.0, %v1726
    %1728 = vmatmul.bf16.gmra.mxu0 %v1696
    %v1729 = vpop.f32.mrf.mxu0
    %v1730 = vadd.f32 0.0, %v1729
    %v1731 = vpop.f32.mrf.mxu0
    %v1732 = vadd.f32 0.0, %v1731
    %1733 = vmatmul.bf16.gmra.mxu0 %v1699
    %v1734 = vpop.f32.mrf.mxu0
    %v1735 = vadd.f32 0.0, %v1734
    %v1736 = vpop.f32.mrf.mxu0
    %v1737 = vadd.f32 0.0, %v1736
    %1738 = vmatmul.bf16.gmra.mxu0 %v1702
    %v1739 = vpop.f32.mrf.mxu0
    %v1740 = vadd.f32 0.0, %v1739
    %v1741 = vpop.f32.mrf.mxu0
    %v1742 = vadd.f32 0.0, %v1741
    %1743 = vmatmul.bf16.gmra.mxu0 %v1705
    %v1744 = vpop.f32.mrf.mxu0
    %v1745 = vadd.f32 0.0, %v1744
    %v1746 = vpop.f32.mrf.mxu0
    %v1747 = vadd.f32 0.0, %v1746
    %1748 = vmatmul.bf16.gmra.mxu0 %v1708
    %v1749 = vpop.f32.mrf.mxu0
    %v1750 = vadd.f32 0.0, %v1749
    %v1751 = vpop.f32.mrf.mxu0
    %v1752 = vadd.f32 0.0, %v1751
    %1753 = vdwg.mxu0
    %v1758 = vunpack.c.l.b16 %v1653
    %v1759 = vunpack.c.l.b16 %v1654
    %v1760 = vunpack.c.l.b16 %v1655
    %v1761 = vunpack.c.l.b16 %v1656
    %v1762 = vpack.c.b16 %v1759, %v1758
    %v1763 = vpack.c.b16 %v1761, %v1760
    %v1767 = vsel %vm723, %v1663, 0
    %v1770 = vsel %vm723, %v1664, 0
    %v1773 = vsel %vm723, %v1665, 0
    %v1776 = vsel %vm723, %v1666, 0
    %v1779 = vsel %vm723, %v1667, 0
    %v1782 = vsel %vm723, %v1668, 0
    %v1785 = vsel %vm723, %v1669, 0
    %1787 = vmatpush.bf16.msra.mxu0 0
    %1788 = vmatpush.bf16.msra.mxu0 0
    %1789 = vmatpush.bf16.msra.mxu0 0
    %1790 = vmatpush.bf16.msra.mxu0 0
    %1791 = vmatpush.bf16.msra.mxu0 0
    %1792 = vmatpush.bf16.msra.mxu0 0
    %1793 = vmatpush.bf16.msra.mxu0 %v1763
    %1794 = vmatpush.bf16.msra.mxu0 %v1762
    %1795 = vmatmul.bf16.gmra.mxu0 %v1767
    %v1796 = vpop.f32.mrf.mxu0
    %v1797 = vadd.f32 %v1720, %v1796
    %v1798 = vpop.f32.mrf.mxu0
    %v1799 = vadd.f32 %v1722, %v1798
    %1800 = vmatmul.bf16.gmra.mxu0 %v1770
    %v1801 = vpop.f32.mrf.mxu0
    %v1802 = vadd.f32 %v1725, %v1801
    %v1803 = vpop.f32.mrf.mxu0
    %v1804 = vadd.f32 %v1727, %v1803
    %1805 = vmatmul.bf16.gmra.mxu0 %v1773
    %v1806 = vpop.f32.mrf.mxu0
    %v1807 = vadd.f32 %v1730, %v1806
    %v1808 = vpop.f32.mrf.mxu0
    %v1809 = vadd.f32 %v1732, %v1808
    %1810 = vmatmul.bf16.gmra.mxu0 %v1776
    %v1811 = vpop.f32.mrf.mxu0
    %v1812 = vadd.f32 %v1735, %v1811
    %v1813 = vpop.f32.mrf.mxu0
    %v1814 = vadd.f32 %v1737, %v1813
    %1815 = vmatmul.bf16.gmra.mxu0 %v1779
    %v1816 = vpop.f32.mrf.mxu0
    %v1817 = vadd.f32 %v1740, %v1816
    %v1818 = vpop.f32.mrf.mxu0
    %v1819 = vadd.f32 %v1742, %v1818
    %1820 = vmatmul.bf16.gmra.mxu0 %v1782
    %v1821 = vpop.f32.mrf.mxu0
    %v1822 = vadd.f32 %v1745, %v1821
    %v1823 = vpop.f32.mrf.mxu0
    %v1824 = vadd.f32 %v1747, %v1823
    %1825 = vmatmul.bf16.gmra.mxu0 %v1785
    %v1826 = vpop.f32.mrf.mxu0
    %v1827 = vadd.f32 %v1750, %v1826
    %v1828 = vpop.f32.mrf.mxu0
    %v1829 = vadd.f32 %v1752, %v1828
    %1830 = vdwg.mxu0
    %v1833 = vunpack.c.l.b16 %v1661
    %v1834 = vunpack.c.l.b16 %v1662
    %v1835 = vpack.c.b16 %v1834, %v1833
    %1837 = vmatpush.bf16.msra.mxu0 0
    %1838 = vmatpush.bf16.msra.mxu0 0
    %1839 = vmatpush.bf16.msra.mxu0 0
    %1840 = vmatpush.bf16.msra.mxu0 0
    %1841 = vmatpush.bf16.msra.mxu0 0
    %1842 = vmatpush.bf16.msra.mxu0 0
    %1843 = vmatpush.bf16.msra.mxu0 0
    %1844 = vmatpush.bf16.msra.mxu0 %v1835
    %1845 = vmatmul.bf16.gmra.mxu0 %v873
    %v1846 = vpop.f32.mrf.mxu0
    %v1847 = vadd.f32 0.0, %v1846
    %v1848 = vpop.f32.mrf.mxu0
    %v1849 = vadd.f32 0.0, %v1848
    %1850 = vmatmul.bf16.gmra.mxu0 %v876
    %v1851 = vpop.f32.mrf.mxu0
    %v1852 = vadd.f32 0.0, %v1851
    %v1853 = vpop.f32.mrf.mxu0
    %v1854 = vadd.f32 0.0, %v1853
    %1855 = vmatmul.bf16.gmra.mxu0 %v879
    %v1856 = vpop.f32.mrf.mxu0
    %v1857 = vadd.f32 0.0, %v1856
    %v1858 = vpop.f32.mrf.mxu0
    %v1859 = vadd.f32 0.0, %v1858
    %1860 = vmatmul.bf16.gmra.mxu0 %v882
    %v1861 = vpop.f32.mrf.mxu0
    %v1862 = vadd.f32 0.0, %v1861
    %v1863 = vpop.f32.mrf.mxu0
    %v1864 = vadd.f32 0.0, %v1863
    %1865 = vmatmul.bf16.gmra.mxu0 %v885
    %v1866 = vpop.f32.mrf.mxu0
    %v1867 = vadd.f32 0.0, %v1866
    %v1868 = vpop.f32.mrf.mxu0
    %v1869 = vadd.f32 0.0, %v1868
    %1870 = vmatmul.bf16.gmra.mxu0 %v888
    %v1871 = vpop.f32.mrf.mxu0
    %v1872 = vadd.f32 0.0, %v1871
    %v1873 = vpop.f32.mrf.mxu0
    %v1874 = vadd.f32 0.0, %v1873
    %1875 = vmatmul.bf16.gmra.mxu0 %v891
    %v1876 = vpop.f32.mrf.mxu0
    %v1877 = vadd.f32 0.0, %v1876
    %v1878 = vpop.f32.mrf.mxu0
    %v1879 = vadd.f32 0.0, %v1878
    %1880 = vdwg.mxu0
    %v1881 = vadd.f32 %v1797, %v1847
    %v1882 = vadd.f32 %v1799, %v1849
    %v1883 = vadd.f32 %v1802, %v1852
    %v1884 = vadd.f32 %v1804, %v1854
    %v1885 = vadd.f32 %v1807, %v1857
    %v1886 = vadd.f32 %v1809, %v1859
    %v1887 = vadd.f32 %v1812, %v1862
    %v1888 = vadd.f32 %v1814, %v1864
    %v1889 = vadd.f32 %v1817, %v1867
    %v1890 = vadd.f32 %v1819, %v1869
    %v1891 = vadd.f32 %v1822, %v1872
    %v1892 = vadd.f32 %v1824, %v1874
    %v1893 = vadd.f32 %v1827, %v1877
    %v1894 = vadd.f32 %v1829, %v1879
    %s1895 = scalar_lea.vmem %s9, 1
    %v1896 = vld [vmem:[%s1895] sm:$0x1]
    %v1898 = vperm.slane %v1896, 0
    %v1900 = vadd.f32 %v1881, %v1898
    %v1901 = vadd.f32 %v1882, %v1898
    %v1902 = vadd.f32 %v1883, %v1898
    %v1903 = vadd.f32 %v1884, %v1898
    %v1904 = vadd.f32 %v1885, %v1898
    %v1905 = vadd.f32 %v1886, %v1898
    %v1906 = vadd.f32 %v1887, %v1898
    %v1907 = vadd.f32 %v1888, %v1898
    %v1908 = vadd.f32 %v1889, %v1898
    %v1909 = vadd.f32 %v1890, %v1898
    %v1910 = vadd.f32 %v1891, %v1898
    %v1911 = vadd.f32 %v1892, %v1898
    %v1912 = vadd.f32 %v1893, %v1898
    %v1913 = vadd.f32 %v1894, %v1898
    %v1914 = vxor.u32 %v1900, 2147483648
    %v1915 = vxor.u32 %v1901, 2147483648
    %v1916 = vxor.u32 %v1902, 2147483648
    %v1917 = vxor.u32 %v1903, 2147483648
    %v1918 = vxor.u32 %v1904, 2147483648
    %v1919 = vxor.u32 %v1905, 2147483648
    %v1920 = vxor.u32 %v1906, 2147483648
    %v1921 = vxor.u32 %v1907, 2147483648
    %v1922 = vxor.u32 %v1908, 2147483648
    %v1923 = vxor.u32 %v1909, 2147483648
    %v1924 = vxor.u32 %v1910, 2147483648
    %v1925 = vxor.u32 %v1911, 2147483648
    %v1926 = vxor.u32 %v1912, 2147483648
    %v1927 = vxor.u32 %v1913, 2147483648
    %v1928 = vmul.f32 %v1914, 1.442695
    %v1929 = vpow.pop %v1928
    %v1930 = vmul.f32 %v1915, 1.442695
    %v1931 = vpow.pop %v1930
    %v1932 = vmul.f32 %v1916, 1.442695
    %v1933 = vpow.pop %v1932
    %v1934 = vmul.f32 %v1917, 1.442695
    %v1935 = vpow.pop %v1934
    %v1936 = vmul.f32 %v1918, 1.442695
    %v1937 = vpow.pop %v1936
    %v1938 = vmul.f32 %v1919, 1.442695
    %v1939 = vpow.pop %v1938
    %v1940 = vmul.f32 %v1920, 1.442695
    %v1941 = vpow.pop %v1940
    %v1942 = vmul.f32 %v1921, 1.442695
    %v1943 = vpow.pop %v1942
    %v1944 = vmul.f32 %v1922, 1.442695
    %v1945 = vpow.pop %v1944
    %v1946 = vmul.f32 %v1923, 1.442695
    %v1947 = vpow.pop %v1946
    %v1948 = vmul.f32 %v1924, 1.442695
    %v1949 = vpow.pop %v1948
    %v1950 = vmul.f32 %v1925, 1.442695
    %v1951 = vpow.pop %v1950
    %v1952 = vmul.f32 %v1926, 1.442695
    %v1953 = vpow.pop %v1952
    %v1954 = vmul.f32 %v1927, 1.442695
    %v1955 = vpow.pop %v1954
    %v1956 = vadd.f32 %v1929, 1.0
    %v1957 = vadd.f32 %v1931, 1.0
    %v1958 = vadd.f32 %v1933, 1.0
    %v1959 = vadd.f32 %v1935, 1.0
    %v1960 = vadd.f32 %v1937, 1.0
    %v1961 = vadd.f32 %v1939, 1.0
    %v1962 = vadd.f32 %v1941, 1.0
    %v1963 = vadd.f32 %v1943, 1.0
    %v1964 = vadd.f32 %v1945, 1.0
    %v1965 = vadd.f32 %v1947, 1.0
    %v1966 = vadd.f32 %v1949, 1.0
    %v1967 = vadd.f32 %v1951, 1.0
    %v1968 = vadd.f32 %v1953, 1.0
    %v1969 = vadd.f32 %v1955, 1.0
    %v1970 = vrcp.pop %v1956
    %v1971 = vmul.f32 %v1956, %v1970
    %v1972 = vsub.f32 1.0, %v1971
    %v1973 = vmul.f32 %v1970, %v1972
    %v1974 = vadd.f32 %v1970, %v1973
    %vm1975 = vweird.f32 %v1956
    %vm1976 = vweird.f32 %v1970
    %vm1977 = vmor %vm1975, %vm1976
    %v1978 = vsel %vm1977, %v1970, %v1974
    %v1979 = vand.u32 2147483647, %v1956
    %vm1980 = vcmp.eq.f32.partialorder %v1979, 8.507059e+37
    %v1981 = vand.u32 %v1956, 2147483648
    %v1982 = vor.u32 1.1754944e-38, %v1981
    %v1983 = vsel %vm1980, %v1982, %v1978
    %v1984 = vmul.f32 1.0, %v1983
    %v1985 = vrcp.pop %v1957
    %v1986 = vmul.f32 %v1957, %v1985
    %v1987 = vsub.f32 1.0, %v1986
    %v1988 = vmul.f32 %v1985, %v1987
    %v1989 = vadd.f32 %v1985, %v1988
    %vm1990 = vweird.f32 %v1957
    %vm1991 = vweird.f32 %v1985
    %vm1992 = vmor %vm1990, %vm1991
    %v1993 = vsel %vm1992, %v1985, %v1989
    %v1994 = vand.u32 2147483647, %v1957
    %vm1995 = vcmp.eq.f32.partialorder %v1994, 8.507059e+37
    %v1996 = vand.u32 %v1957, 2147483648
    %v1997 = vor.u32 1.1754944e-38, %v1996
    %v1998 = vsel %vm1995, %v1997, %v1993
    %v1999 = vmul.f32 1.0, %v1998
    %v2000 = vrcp.pop %v1958
    %v2001 = vmul.f32 %v1958, %v2000
    %v2002 = vsub.f32 1.0, %v2001
    %v2003 = vmul.f32 %v2000, %v2002
    %v2004 = vadd.f32 %v2000, %v2003
    %vm2005 = vweird.f32 %v1958
    %vm2006 = vweird.f32 %v2000
    %vm2007 = vmor %vm2005, %vm2006
    %v2008 = vsel %vm2007, %v2000, %v2004
    %v2009 = vand.u32 2147483647, %v1958
    %vm2010 = vcmp.eq.f32.partialorder %v2009, 8.507059e+37
    %v2011 = vand.u32 %v1958, 2147483648
    %v2012 = vor.u32 1.1754944e-38, %v2011
    %v2013 = vsel %vm2010, %v2012, %v2008
    %v2014 = vmul.f32 1.0, %v2013
    %v2015 = vrcp.pop %v1959
    %v2016 = vmul.f32 %v1959, %v2015
    %v2017 = vsub.f32 1.0, %v2016
    %v2018 = vmul.f32 %v2015, %v2017
    %v2019 = vadd.f32 %v2015, %v2018
    %vm2020 = vweird.f32 %v1959
    %vm2021 = vweird.f32 %v2015
    %vm2022 = vmor %vm2020, %vm2021
    %v2023 = vsel %vm2022, %v2015, %v2019
    %v2024 = vand.u32 2147483647, %v1959
    %vm2025 = vcmp.eq.f32.partialorder %v2024, 8.507059e+37
    %v2026 = vand.u32 %v1959, 2147483648
    %v2027 = vor.u32 1.1754944e-38, %v2026
    %v2028 = vsel %vm2025, %v2027, %v2023
    %v2029 = vmul.f32 1.0, %v2028
    %v2030 = vrcp.pop %v1960
    %v2031 = vmul.f32 %v1960, %v2030
    %v2032 = vsub.f32 1.0, %v2031
    %v2033 = vmul.f32 %v2030, %v2032
    %v2034 = vadd.f32 %v2030, %v2033
    %vm2035 = vweird.f32 %v1960
    %vm2036 = vweird.f32 %v2030
    %vm2037 = vmor %vm2035, %vm2036
    %v2038 = vsel %vm2037, %v2030, %v2034
    %v2039 = vand.u32 2147483647, %v1960
    %vm2040 = vcmp.eq.f32.partialorder %v2039, 8.507059e+37
    %v2041 = vand.u32 %v1960, 2147483648
    %v2042 = vor.u32 1.1754944e-38, %v2041
    %v2043 = vsel %vm2040, %v2042, %v2038
    %v2044 = vmul.f32 1.0, %v2043
    %v2045 = vrcp.pop %v1961
    %v2046 = vmul.f32 %v1961, %v2045
    %v2047 = vsub.f32 1.0, %v2046
    %v2048 = vmul.f32 %v2045, %v2047
    %v2049 = vadd.f32 %v2045, %v2048
    %vm2050 = vweird.f32 %v1961
    %vm2051 = vweird.f32 %v2045
    %vm2052 = vmor %vm2050, %vm2051
    %v2053 = vsel %vm2052, %v2045, %v2049
    %v2054 = vand.u32 2147483647, %v1961
    %vm2055 = vcmp.eq.f32.partialorder %v2054, 8.507059e+37
    %v2056 = vand.u32 %v1961, 2147483648
    %v2057 = vor.u32 1.1754944e-38, %v2056
    %v2058 = vsel %vm2055, %v2057, %v2053
    %v2059 = vmul.f32 1.0, %v2058
    %v2060 = vrcp.pop %v1962
    %v2061 = vmul.f32 %v1962, %v2060
    %v2062 = vsub.f32 1.0, %v2061
    %v2063 = vmul.f32 %v2060, %v2062
    %v2064 = vadd.f32 %v2060, %v2063
    %vm2065 = vweird.f32 %v1962
    %vm2066 = vweird.f32 %v2060
    %vm2067 = vmor %vm2065, %vm2066
    %v2068 = vsel %vm2067, %v2060, %v2064
    %v2069 = vand.u32 2147483647, %v1962
    %vm2070 = vcmp.eq.f32.partialorder %v2069, 8.507059e+37
    %v2071 = vand.u32 %v1962, 2147483648
    %v2072 = vor.u32 1.1754944e-38, %v2071
    %v2073 = vsel %vm2070, %v2072, %v2068
    %v2074 = vmul.f32 1.0, %v2073
    %v2075 = vrcp.pop %v1963
    %v2076 = vmul.f32 %v1963, %v2075
    %v2077 = vsub.f32 1.0, %v2076
    %v2078 = vmul.f32 %v2075, %v2077
    %v2079 = vadd.f32 %v2075, %v2078
    %vm2080 = vweird.f32 %v1963
    %vm2081 = vweird.f32 %v2075
    %vm2082 = vmor %vm2080, %vm2081
    %v2083 = vsel %vm2082, %v2075, %v2079
    %v2084 = vand.u32 2147483647, %v1963
    %vm2085 = vcmp.eq.f32.partialorder %v2084, 8.507059e+37
    %v2086 = vand.u32 %v1963, 2147483648
    %v2087 = vor.u32 1.1754944e-38, %v2086
    %v2088 = vsel %vm2085, %v2087, %v2083
    %v2089 = vmul.f32 1.0, %v2088
    %v2090 = vrcp.pop %v1964
    %v2091 = vmul.f32 %v1964, %v2090
    %v2092 = vsub.f32 1.0, %v2091
    %v2093 = vmul.f32 %v2090, %v2092
    %v2094 = vadd.f32 %v2090, %v2093
    %vm2095 = vweird.f32 %v1964
    %vm2096 = vweird.f32 %v2090
    %vm2097 = vmor %vm2095, %vm2096
    %v2098 = vsel %vm2097, %v2090, %v2094
    %v2099 = vand.u32 2147483647, %v1964
    %vm2100 = vcmp.eq.f32.partialorder %v2099, 8.507059e+37
    %v2101 = vand.u32 %v1964, 2147483648
    %v2102 = vor.u32 1.1754944e-38, %v2101
    %v2103 = vsel %vm2100, %v2102, %v2098
    %v2104 = vmul.f32 1.0, %v2103
    %v2105 = vrcp.pop %v1965
    %v2106 = vmul.f32 %v1965, %v2105
    %v2107 = vsub.f32 1.0, %v2106
    %v2108 = vmul.f32 %v2105, %v2107
    %v2109 = vadd.f32 %v2105, %v2108
    %vm2110 = vweird.f32 %v1965
    %vm2111 = vweird.f32 %v2105
    %vm2112 = vmor %vm2110, %vm2111
    %v2113 = vsel %vm2112, %v2105, %v2109
    %v2114 = vand.u32 2147483647, %v1965
    %vm2115 = vcmp.eq.f32.partialorder %v2114, 8.507059e+37
    %v2116 = vand.u32 %v1965, 2147483648
    %v2117 = vor.u32 1.1754944e-38, %v2116
    %v2118 = vsel %vm2115, %v2117, %v2113
    %v2119 = vmul.f32 1.0, %v2118
    %v2120 = vrcp.pop %v1966
    %v2121 = vmul.f32 %v1966, %v2120
    %v2122 = vsub.f32 1.0, %v2121
    %v2123 = vmul.f32 %v2120, %v2122
    %v2124 = vadd.f32 %v2120, %v2123
    %vm2125 = vweird.f32 %v1966
    %vm2126 = vweird.f32 %v2120
    %vm2127 = vmor %vm2125, %vm2126
    %v2128 = vsel %vm2127, %v2120, %v2124
    %v2129 = vand.u32 2147483647, %v1966
    %vm2130 = vcmp.eq.f32.partialorder %v2129, 8.507059e+37
    %v2131 = vand.u32 %v1966, 2147483648
    %v2132 = vor.u32 1.1754944e-38, %v2131
    %v2133 = vsel %vm2130, %v2132, %v2128
    %v2134 = vmul.f32 1.0, %v2133
    %v2135 = vrcp.pop %v1967
    %v2136 = vmul.f32 %v1967, %v2135
    %v2137 = vsub.f32 1.0, %v2136
    %v2138 = vmul.f32 %v2135, %v2137
    %v2139 = vadd.f32 %v2135, %v2138
    %vm2140 = vweird.f32 %v1967
    %vm2141 = vweird.f32 %v2135
    %vm2142 = vmor %vm2140, %vm2141
    %v2143 = vsel %vm2142, %v2135, %v2139
    %v2144 = vand.u32 2147483647, %v1967
    %vm2145 = vcmp.eq.f32.partialorder %v2144, 8.507059e+37
    %v2146 = vand.u32 %v1967, 2147483648
    %v2147 = vor.u32 1.1754944e-38, %v2146
    %v2148 = vsel %vm2145, %v2147, %v2143
    %v2149 = vmul.f32 1.0, %v2148
    %v2150 = vrcp.pop %v1968
    %v2151 = vmul.f32 %v1968, %v2150
    %v2152 = vsub.f32 1.0, %v2151
    %v2153 = vmul.f32 %v2150, %v2152
    %v2154 = vadd.f32 %v2150, %v2153
    %vm2155 = vweird.f32 %v1968
    %vm2156 = vweird.f32 %v2150
    %vm2157 = vmor %vm2155, %vm2156
    %v2158 = vsel %vm2157, %v2150, %v2154
    %v2159 = vand.u32 2147483647, %v1968
    %vm2160 = vcmp.eq.f32.partialorder %v2159, 8.507059e+37
    %v2161 = vand.u32 %v1968, 2147483648
    %v2162 = vor.u32 1.1754944e-38, %v2161
    %v2163 = vsel %vm2160, %v2162, %v2158
    %v2164 = vmul.f32 1.0, %v2163
    %v2165 = vrcp.pop %v1969
    %v2166 = vmul.f32 %v1969, %v2165
    %v2167 = vsub.f32 1.0, %v2166
    %v2168 = vmul.f32 %v2165, %v2167
    %v2169 = vadd.f32 %v2165, %v2168
    %vm2170 = vweird.f32 %v1969
    %vm2171 = vweird.f32 %v2165
    %vm2172 = vmor %vm2170, %vm2171
    %v2173 = vsel %vm2172, %v2165, %v2169
    %v2174 = vand.u32 2147483647, %v1969
    %vm2175 = vcmp.eq.f32.partialorder %v2174, 8.507059e+37
    %v2176 = vand.u32 %v1969, 2147483648
    %v2177 = vor.u32 1.1754944e-38, %v2176
    %v2178 = vsel %vm2175, %v2177, %v2173
    %v2179 = vmul.f32 1.0, %v2178
    %vm2180 = vcmp.gt.f32.partialorder %v1900, 20.0
    %vm2181 = vcmp.gt.f32.partialorder %v1901, 20.0
    %vm2182 = vcmp.gt.f32.partialorder %v1902, 20.0
    %vm2183 = vcmp.gt.f32.partialorder %v1903, 20.0
    %vm2184 = vcmp.gt.f32.partialorder %v1904, 20.0
    %vm2185 = vcmp.gt.f32.partialorder %v1905, 20.0
    %vm2186 = vcmp.gt.f32.partialorder %v1906, 20.0
    %vm2187 = vcmp.gt.f32.partialorder %v1907, 20.0
    %vm2188 = vcmp.gt.f32.partialorder %v1908, 20.0
    %vm2189 = vcmp.gt.f32.partialorder %v1909, 20.0
    %vm2190 = vcmp.gt.f32.partialorder %v1910, 20.0
    %vm2191 = vcmp.gt.f32.partialorder %v1911, 20.0
    %vm2192 = vcmp.gt.f32.partialorder %v1912, 20.0
    %vm2193 = vcmp.gt.f32.partialorder %v1913, 20.0
    %v2194 = vmin.f32 %v1900, 20.0
    %v2195 = vmin.f32 %v1901, 20.0
    %v2196 = vmin.f32 %v1902, 20.0
    %v2197 = vmin.f32 %v1903, 20.0
    %v2198 = vmin.f32 %v1904, 20.0
    %v2199 = vmin.f32 %v1905, 20.0
    %v2200 = vmin.f32 %v1906, 20.0
    %v2201 = vmin.f32 %v1907, 20.0
    %v2202 = vmin.f32 %v1908, 20.0
    %v2203 = vmin.f32 %v1909, 20.0
    %v2204 = vmin.f32 %v1910, 20.0
    %v2205 = vmin.f32 %v1911, 20.0
    %v2206 = vmin.f32 %v1912, 20.0
    %v2207 = vmin.f32 %v1913, 20.0
    %v2208 = vmul.f32 %v2194, 1.442695
    %v2209 = vpow.pop %v2208
    %v2210 = vmul.f32 %v2195, 1.442695
    %v2211 = vpow.pop %v2210
    %v2212 = vmul.f32 %v2196, 1.442695
    %v2213 = vpow.pop %v2212
    %v2214 = vmul.f32 %v2197, 1.442695
    %v2215 = vpow.pop %v2214
    %v2216 = vmul.f32 %v2198, 1.442695
    %v2217 = vpow.pop %v2216
    %v2218 = vmul.f32 %v2199, 1.442695
    %v2219 = vpow.pop %v2218
    %v2220 = vmul.f32 %v2200, 1.442695
    %v2221 = vpow.pop %v2220
    %v2222 = vmul.f32 %v2201, 1.442695
    %v2223 = vpow.pop %v2222
    %v2224 = vmul.f32 %v2202, 1.442695
    %v2225 = vpow.pop %v2224
    %v2226 = vmul.f32 %v2203, 1.442695
    %v2227 = vpow.pop %v2226
    %v2228 = vmul.f32 %v2204, 1.442695
    %v2229 = vpow.pop %v2228
    %v2230 = vmul.f32 %v2205, 1.442695
    %v2231 = vpow.pop %v2230
    %v2232 = vmul.f32 %v2206, 1.442695
    %v2233 = vpow.pop %v2232
    %v2234 = vmul.f32 %v2207, 1.442695
    %v2235 = vpow.pop %v2234
    %v2236 = vadd.f32 %v2209, 1.0
    %v2237 = vlog2.pop %v2236
    %v2238 = vmul.f32 %v2237, 0.6931472
    %v2239 = vmul.f32 -0.5, %v2209
    %v2240 = vadd.f32 %v2239, 1.0
    %v2241 = vmul.f32 %v2240, %v2209
    %v2242 = vand.u32 2147483647, %v2209
    %vm2243 = vcmp.lt.f32.partialorder %v2242, 0.0004427343
    %v2244 = vsel %vm2243, %v2241, %v2238
    %v2245 = vadd.f32 %v2211, 1.0
    %v2246 = vlog2.pop %v2245
    %v2247 = vmul.f32 %v2246, 0.6931472
    %v2248 = vmul.f32 -0.5, %v2211
    %v2249 = vadd.f32 %v2248, 1.0
    %v2250 = vmul.f32 %v2249, %v2211
    %v2251 = vand.u32 2147483647, %v2211
    %vm2252 = vcmp.lt.f32.partialorder %v2251, 0.0004427343
    %v2253 = vsel %vm2252, %v2250, %v2247
    %v2254 = vadd.f32 %v2213, 1.0
    %v2255 = vlog2.pop %v2254
    %v2256 = vmul.f32 %v2255, 0.6931472
    %v2257 = vmul.f32 -0.5, %v2213
    %v2258 = vadd.f32 %v2257, 1.0
    %v2259 = vmul.f32 %v2258, %v2213
    %v2260 = vand.u32 2147483647, %v2213
    %vm2261 = vcmp.lt.f32.partialorder %v2260, 0.0004427343
    %v2262 = vsel %vm2261, %v2259, %v2256
    %v2263 = vadd.f32 %v2215, 1.0
    %v2264 = vlog2.pop %v2263
    %v2265 = vmul.f32 %v2264, 0.6931472
    %v2266 = vmul.f32 -0.5, %v2215
    %v2267 = vadd.f32 %v2266, 1.0
    %v2268 = vmul.f32 %v2267, %v2215
    %v2269 = vand.u32 2147483647, %v2215
    %vm2270 = vcmp.lt.f32.partialorder %v2269, 0.0004427343
    %v2271 = vsel %vm2270, %v2268, %v2265
    %v2272 = vadd.f32 %v2217, 1.0
    %v2273 = vlog2.pop %v2272
    %v2274 = vmul.f32 %v2273, 0.6931472
    %v2275 = vmul.f32 -0.5, %v2217
    %v2276 = vadd.f32 %v2275, 1.0
    %v2277 = vmul.f32 %v2276, %v2217
    %v2278 = vand.u32 2147483647, %v2217
    %vm2279 = vcmp.lt.f32.partialorder %v2278, 0.0004427343
    %v2280 = vsel %vm2279, %v2277, %v2274
    %v2281 = vadd.f32 %v2219, 1.0
    %v2282 = vlog2.pop %v2281
    %v2283 = vmul.f32 %v2282, 0.6931472
    %v2284 = vmul.f32 -0.5, %v2219
    %v2285 = vadd.f32 %v2284, 1.0
    %v2286 = vmul.f32 %v2285, %v2219
    %v2287 = vand.u32 2147483647, %v2219
    %vm2288 = vcmp.lt.f32.partialorder %v2287, 0.0004427343
    %v2289 = vsel %vm2288, %v2286, %v2283
    %v2290 = vadd.f32 %v2221, 1.0
    %v2291 = vlog2.pop %v2290
    %v2292 = vmul.f32 %v2291, 0.6931472
    %v2293 = vmul.f32 -0.5, %v2221
    %v2294 = vadd.f32 %v2293, 1.0
    %v2295 = vmul.f32 %v2294, %v2221
    %v2296 = vand.u32 2147483647, %v2221
    %vm2297 = vcmp.lt.f32.partialorder %v2296, 0.0004427343
    %v2298 = vsel %vm2297, %v2295, %v2292
    %v2299 = vadd.f32 %v2223, 1.0
    %v2300 = vlog2.pop %v2299
    %v2301 = vmul.f32 %v2300, 0.6931472
    %v2302 = vmul.f32 -0.5, %v2223
    %v2303 = vadd.f32 %v2302, 1.0
    %v2304 = vmul.f32 %v2303, %v2223
    %v2305 = vand.u32 2147483647, %v2223
    %vm2306 = vcmp.lt.f32.partialorder %v2305, 0.0004427343
    %v2307 = vsel %vm2306, %v2304, %v2301
    %v2308 = vadd.f32 %v2225, 1.0
    %v2309 = vlog2.pop %v2308
    %v2310 = vmul.f32 %v2309, 0.6931472
    %v2311 = vmul.f32 -0.5, %v2225
    %v2312 = vadd.f32 %v2311, 1.0
    %v2313 = vmul.f32 %v2312, %v2225
    %v2314 = vand.u32 2147483647, %v2225
    %vm2315 = vcmp.lt.f32.partialorder %v2314, 0.0004427343
    %v2316 = vsel %vm2315, %v2313, %v2310
    %v2317 = vadd.f32 %v2227, 1.0
    %v2318 = vlog2.pop %v2317
    %v2319 = vmul.f32 %v2318, 0.6931472
    %v2320 = vmul.f32 -0.5, %v2227
    %v2321 = vadd.f32 %v2320, 1.0
    %v2322 = vmul.f32 %v2321, %v2227
    %v2323 = vand.u32 2147483647, %v2227
    %vm2324 = vcmp.lt.f32.partialorder %v2323, 0.0004427343
    %v2325 = vsel %vm2324, %v2322, %v2319
    %v2326 = vadd.f32 %v2229, 1.0
    %v2327 = vlog2.pop %v2326
    %v2328 = vmul.f32 %v2327, 0.6931472
    %v2329 = vmul.f32 -0.5, %v2229
    %v2330 = vadd.f32 %v2329, 1.0
    %v2331 = vmul.f32 %v2330, %v2229
    %v2332 = vand.u32 2147483647, %v2229
    %vm2333 = vcmp.lt.f32.partialorder %v2332, 0.0004427343
    %v2334 = vsel %vm2333, %v2331, %v2328
    %v2335 = vadd.f32 %v2231, 1.0
    %v2336 = vlog2.pop %v2335
    %v2337 = vmul.f32 %v2336, 0.6931472
    %v2338 = vmul.f32 -0.5, %v2231
    %v2339 = vadd.f32 %v2338, 1.0
    %v2340 = vmul.f32 %v2339, %v2231
    %v2341 = vand.u32 2147483647, %v2231
    %vm2342 = vcmp.lt.f32.partialorder %v2341, 0.0004427343
    %v2343 = vsel %vm2342, %v2340, %v2337
    %v2344 = vadd.f32 %v2233, 1.0
    %v2345 = vlog2.pop %v2344
    %v2346 = vmul.f32 %v2345, 0.6931472
    %v2347 = vmul.f32 -0.5, %v2233
    %v2348 = vadd.f32 %v2347, 1.0
    %v2349 = vmul.f32 %v2348, %v2233
    %v2350 = vand.u32 2147483647, %v2233
    %vm2351 = vcmp.lt.f32.partialorder %v2350, 0.0004427343
    %v2352 = vsel %vm2351, %v2349, %v2346
    %v2353 = vadd.f32 %v2235, 1.0
    %v2354 = vlog2.pop %v2353
    %v2355 = vmul.f32 %v2354, 0.6931472
    %v2356 = vmul.f32 -0.5, %v2235
    %v2357 = vadd.f32 %v2356, 1.0
    %v2358 = vmul.f32 %v2357, %v2235
    %v2359 = vand.u32 2147483647, %v2235
    %vm2360 = vcmp.lt.f32.partialorder %v2359, 0.0004427343
    %v2361 = vsel %vm2360, %v2358, %v2355
    %v2362 = vsel %vm2180, %v1900, %v2244
    %v2363 = vsel %vm2181, %v1901, %v2253
    %v2364 = vsel %vm2182, %v1902, %v2262
    %v2365 = vsel %vm2183, %v1903, %v2271
    %v2366 = vsel %vm2184, %v1904, %v2280
    %v2367 = vsel %vm2185, %v1905, %v2289
    %v2368 = vsel %vm2186, %v1906, %v2298
    %v2369 = vsel %vm2187, %v1907, %v2307
    %v2370 = vsel %vm2188, %v1908, %v2316
    %v2371 = vsel %vm2189, %v1909, %v2325
    %v2372 = vsel %vm2190, %v1910, %v2334
    %v2373 = vsel %vm2191, %v1911, %v2343
    %v2374 = vsel %vm2192, %v1912, %v2352
    %v2375 = vsel %vm2193, %v1913, %v2361
    %2390 = vrot.lane.b32.xlu0 %v2362, 96
    %v2391 = vpop.permute.xlu0 %2390
    %2392 = vrot.lane.b32.xlu0 %v2363, 96
    %v2393 = vpop.permute.xlu0 %2392
    %2394 = vrot.lane.b32.xlu0 %v2364, 96
    %v2395 = vpop.permute.xlu0 %2394
    %2396 = vrot.lane.b32.xlu0 %v2365, 96
    %v2397 = vpop.permute.xlu0 %2396
    %2398 = vrot.lane.b32.xlu0 %v2366, 96
    %v2399 = vpop.permute.xlu0 %2398
    %2400 = vrot.lane.b32.xlu0 %v2367, 96
    %v2401 = vpop.permute.xlu0 %2400
    %2402 = vrot.lane.b32.xlu0 %v2368, 96
    %v2403 = vpop.permute.xlu0 %2402
    %2404 = vrot.lane.b32.xlu0 %v2369, 96
    %v2405 = vpop.permute.xlu0 %2404
    %2406 = vrot.lane.b32.xlu0 %v2370, 96
    %v2407 = vpop.permute.xlu0 %2406
    %2408 = vrot.lane.b32.xlu0 %v2371, 96
    %v2409 = vpop.permute.xlu0 %2408
    %2410 = vrot.lane.b32.xlu0 %v2372, 96
    %v2411 = vpop.permute.xlu0 %2410
    %2412 = vrot.lane.b32.xlu0 %v2373, 96
    %v2413 = vpop.permute.xlu0 %2412
    %2414 = vrot.lane.b32.xlu0 %v2374, 96
    %v2415 = vpop.permute.xlu0 %2414
    %2416 = vrot.lane.b32.xlu0 %v2375, 96
    %v2417 = vpop.permute.xlu0 %2416
    %v2432 = vmul.f32 %v1984, %v2391
    %v2433 = vmul.f32 %v1999, %v2393
    %v2434 = vmul.f32 %v2014, %v2395
    %v2435 = vmul.f32 %v2029, %v2397
    %v2436 = vmul.f32 %v2044, %v2399
    %v2437 = vmul.f32 %v2059, %v2401
    %v2438 = vmul.f32 %v2074, %v2403
    %v2439 = vmul.f32 %v2089, %v2405
    %v2440 = vmul.f32 %v2104, %v2407
    %v2441 = vmul.f32 %v2119, %v2409
    %v2442 = vmul.f32 %v2134, %v2411
    %v2443 = vmul.f32 %v2149, %v2413
    %v2444 = vmul.f32 %v2164, %v2415
    %v2445 = vmul.f32 %v2179, %v2417
    %v2446 = vpack.c.bf16 %v2433, %v2432
    %v2447 = vpack.c.bf16 %v2435, %v2434
    %v2448 = vpack.c.bf16 %v2437, %v2436
    %v2449 = vpack.c.bf16 %v2439, %v2438
    %v2450 = vpack.c.bf16 %v2441, %v2440
    %v2451 = vpack.c.bf16 %v2443, %v2442
    %v2452 = vpack.c.bf16 %v2445, %v2444
    %2453 = vmatpush.bf16.msra.mxu0 0
    %2454 = vmatpush.bf16.msra.mxu0 %v2452
    %2455 = vmatpush.bf16.msra.mxu0 %v2451
    %2456 = vmatpush.bf16.msra.mxu0 %v2450
    %2457 = vmatpush.bf16.msra.mxu0 %v2449
    %2458 = vmatpush.bf16.msra.mxu0 %v2448
    %2459 = vmatpush.bf16.msra.mxu0 %v2447
    %2460 = vmatpush.bf16.msra.mxu0 %v2446
    %2461 = vmatmul.bf16.gmra.mxu0 %v1510
    %v2462 = vpop.f32.mrf.mxu0
    %v2463 = vadd.f32 0.0, %v2462
    %v2464 = vpop.f32.mrf.mxu0
    %v2465 = vadd.f32 0.0, %v2464
    %2466 = vdwg.mxu0
    %s2467 = scalar_lea.vmem %s12, 1
    %v2468 = vld [vmem:[%s2467] sm:$0x1]
    %v2470 = vperm.slane %v2468, 0
    %v2472 = vsub.f32 %v2463, %v2470
    %v2473 = vsub.f32 %v2465, %v2470
    %s2474 = scalar_lea.vmem %s13, 1
    %v2475 = vld [vmem:[%s2474] sm:$0x1]
    %v2476 = vadd.f32 %v2475, 1e-05
    %v2477 = vrsqrt.pop %v2476
    %v2478 = vmul.f32 %v2477, %v2476
    %v2479 = vmul.f32 %v2478, %v2477
    %v2480 = vmul.f32 0.5, %v2479
    %v2481 = vsub.f32 1.5, %v2480
    %v2482 = vmul.f32 %v2477, %v2481
    %vm2483 = vweird.f32 %v2476
    %vm2484 = vweird.f32 %v2477
    %vm2485 = vmor %vm2483, %vm2484
    %v2486 = vsel %vm2485, %v2477, %v2482
    %v2488 = vperm.slane %v2486, 0
    %v2490 = vmul.f32 %v2472, %v2488
    %v2491 = vmul.f32 %v2473, %v2488
    %s2492 = scalar_lea.vmem %s10, 1
    %v2493 = vld [vmem:[%s2492] sm:$0x1]
    %v2495 = vperm.slane %v2493, 0
    %v2497 = vmul.f32 %v2490, %v2495
    %v2498 = vmul.f32 %v2491, %v2495
    %s2499 = scalar_lea.vmem %s11, 1
    %v2500 = vld [vmem:[%s2499] sm:$0x1]
    %v2502 = vperm.slane %v2500, 0
    %v2504 = vadd.f32 %v2497, %v2502
    %v2505 = vadd.f32 %v2498, %v2502
    %v2506 = vadd.f32 %v2504, %v1561
    %v2507 = vadd.f32 %v2505, %v1562
    %2508 = vst.msk [vmem:[#allocation2] sm:$0xff] %vm723, %v2506
    %2509 = vst.msk [vmem:[#allocation2 + $0x8] sm:$0xff] %vm723, %v2507
    // Predicated region
    $region58: #{tpu_custom_call.1} parent=1 // pred_check
      _
    $region59: #{tpu_custom_call.1} parent=1 // pred_check_branch
      %2511 = sbr.rel (0) target = $region61
    $region60: #{tpu_custom_call.1} parent=1 // pred_region
      %2513 = vsyncadd [#allocation3], 0
      %s2514 = sshll.u32 [#allocation2], 4
      %s2515 = int_to_ptr.vmem [resolvable:$true] %s2514
      %s2516 = sshll.u32 %s14, 4
      %s2517 = int_to_ptr.hbm [resolvable:$true] %s2516
      %2522 = dma.vmem_to_hbm [thread:$0]  %s2515, 256, %s2517, [#allocation3], 128, 128, 8
    $region61: #{tpu_custom_call.1} parent=1 // pred_fallthru
      _
    // Predicated region
    $region62: #{tpu_custom_call.1} parent=1 // pred_check
      _
    $region63: #{tpu_custom_call.1} parent=1 // pred_check_branch
      %2524 = sbr.rel (0) target = $region65
    $region64: #{tpu_custom_call.1} parent=1 // pred_region
      %2526 = dma.done [#allocation3], 256
    $region65: #{tpu_custom_call.1} parent=1 // pred_fallthru
      _
    %2527 = vsyncpa [#allocation3], 1

</llo_original>
